<compile_context>
chip_gen: v7x
topology: tpu7x:2x2x1
jax: 0.10.0
libtpu: 0.0.40
codegen_flags: <defaults>
</compile_context>

<pallas_src>
import functools

import jax
import jax.numpy as jnp
from jax import lax
from jax.experimental import pallas as pl
from jax.experimental.pallas import tpu as pltpu


def _round_up(x, m):
    return (x + m - 1) // m * m


# ---------------------------------------------------------------------------
# Fused kernel: one batch block (NB images folded on the lane axis) per step.
# ---------------------------------------------------------------------------
def _inception_kernel(x_ref, w_ref, o_ref, *,
                      cin, cpad, wp, seg, base, t, nb,
                      c1o, c2o, c3o, c4o, bcol):
    f32 = jnp.float32
    cin1 = cin + 1
    ca = c1o + 2 * cpad                        # rows of the merged 1x1 weight
    r2b, r3b, r4 = ca, ca + c2o, ca + c2o + c3o
    co = (0, c1o, c1o + c2o, c1o + c2o + c3o, c1o + c2o + c3o + c4o)

    x = x_ref[...]                             # (cin+1, nb*seg); row cin = mask

    # -- merged first-stage 1x1 convs (branch-1 out / h2 / h3 share RHS x) --
    # Bias is folded through the mask row, so halo / gap columns are exactly 0
    # (the zero padding the 3x3 / 5x5 convs need) without a mask multiply.
    wa = w_ref[0:ca, 0:cin1]
    ha = jnp.maximum(jnp.dot(wa, x, preferred_element_type=f32), 0.0)

    offs = tuple(j * seg + base for j in range(nb))     # 128-aligned per image

    def win(m, s):
        """Output-window columns (tap shift s) of every image, lane-concat."""
        parts = [m[:, o + s:o + s + t] for o in offs]
        return parts[0] if nb == 1 else jnp.concatenate(parts, axis=1)

    def taps(k):
        r = k // 2
        return [dh * wp + dw for dh in range(-r, r + 1) for dw in range(-r, r + 1)]

    def conv_kxk(h_rows, k, r0, cout):
        # Build the im2col patch in bf16 (half the slice/store traffic and
        # bf16-native MXU on v6e/v7x); accumulate in f32.
        hb = h_rows.astype(jnp.bfloat16)
        p = jnp.concatenate([win(hb, s) for s in taps(k)], axis=0)
        wk = w_ref[r0:r0 + cout, 0:k * k * cpad].astype(jnp.bfloat16)
        bk = w_ref[r0:r0 + cout, bcol:bcol + 1]
        return jnp.maximum(jnp.dot(wk, p, preferred_element_type=f32) + bk, 0.0)

    # ---- branch 1: 1x1 conv + ReLU (output-window columns of ha rows 0:c1o)
    o_ref[co[0]:co[1], :] = win(ha[0:c1o], 0)
    # ---- branch 2: 1x1 + ReLU -> 3x3 (pad 1) + ReLU
    o_ref[co[1]:co[2], :] = conv_kxk(ha[c1o:c1o + cpad], 3, r2b, c2o)
    # ---- branch 3: 1x1 + ReLU -> 5x5 (pad 2) + ReLU
    o_ref[co[2]:co[3], :] = conv_kxk(ha[c1o + cpad:ca], 5, r3b, c3o)
    # ---- branch 4: 3x3 max-pool (stride 1, pad 1) -> ReLU -> 1x1 -> ReLU
    pooled = functools.reduce(jnp.maximum, [win(x[0:cin], s) for s in taps(3)])
    pooled = jnp.maximum(pooled, 0.0)
    w4 = w_ref[r4:r4 + c4o, 0:cin]
    b4 = w_ref[r4:r4 + c4o, bcol:bcol + 1]
    o_ref[co[3]:co[4], :] = jnp.maximum(
        jnp.dot(w4, pooled, preferred_element_type=f32) + b4, 0.0)


# ---------------------------------------------------------------------------
# Weight repacking: torch Conv2d layout -> one stacked (rows, bcol+1) matrix.
# ---------------------------------------------------------------------------
def _pack_weights(params, cin, cpad, bcol):
    c1o = int(params["c1_w"].shape[0])
    c2o = int(params["c2b_w"].shape[0])
    c3o = int(params["c3b_w"].shape[0])
    c4o = int(params["c4_w"].shape[0])
    cin1 = cin + 1
    ca = c1o + 2 * cpad
    rows = ca + c2o + c3o + c4o
    W = jnp.zeros((rows, bcol + 1), jnp.float32)

    def put_1x1_bias_folded(W, r0, w, b):
        cout = int(w.shape[0])
        wb = jnp.concatenate([w.reshape(cout, cin).astype(jnp.float32),
                              b.reshape(cout, 1).astype(jnp.float32)], axis=1)
        return W.at[r0:r0 + cout, 0:cin1].set(wb)

    def put_kxk(W, r0, w, b):
        cout, cmid, k, _ = (int(s) for s in w.shape)
        wt = jnp.transpose(w, (0, 2, 3, 1)).astype(jnp.float32)     # (cout,k,k,cmid)
        wt = jnp.pad(wt, ((0, 0), (0, 0), (0, 0), (0, cpad - cmid)))
        W = W.at[r0:r0 + cout, 0:k * k * cpad].set(wt.reshape(cout, k * k * cpad))
        return W.at[r0:r0 + cout, bcol:bcol + 1].set(
            b.reshape(cout, 1).astype(jnp.float32))

    W = put_1x1_bias_folded(W, 0, params["c1_w"], params["c1_b"])
    W = put_1x1_bias_folded(W, c1o, params["c2a_w"], params["c2a_b"])
    W = put_1x1_bias_folded(W, c1o + cpad, params["c3a_w"], params["c3a_b"])
    W = put_kxk(W, ca, params["c2b_w"], params["c2b_b"])
    W = put_kxk(W, ca + c2o, params["c3b_w"], params["c3b_b"])
    r4 = ca + c2o + c3o
    W = W.at[r4:r4 + c4o, 0:cin].set(
        params["c4_w"].reshape(c4o, cin).astype(jnp.float32))
    W = W.at[r4:r4 + c4o, bcol:bcol + 1].set(
        params["c4_b"].reshape(c4o, 1).astype(jnp.float32))
    return W, (c1o, c2o, c3o, c4o)


# ---------------------------------------------------------------------------
# Forward pass (Pallas)
# ---------------------------------------------------------------------------
def inception_forward(x_nchw, params):
    x = x_nchw.astype(jnp.float32)
    n, cin, h, w = (int(s) for s in x.shape)

    pad = 2                                    # max halo needed (5x5 conv)
    hp, wp = h + 2 * pad, w + 2 * pad
    istart = pad * wp + pad                    # flat index of interior (0, 0)
    base = _round_up(max(istart, 1), 128)      # 128-aligned interior start
    lead = base - istart
    tout = _round_up(h * wp, 128)              # lane-dense per-image out width
    seg = _round_up(max(base + tout + istart, lead + hp * wp), 128)

    # 2-way "parallel" grid (keeps both v7x TCs busy); remaining batch folded
    # onto the lane axis so v5e/v6e pay at most 2 grid-step overheads.
    nblk = min(2, n)
    nb = -(-n // nblk)
    npad = nblk * nb - n

    x_p = jnp.pad(x, ((0, npad), (0, 0), (pad, pad), (pad, pad)))
    x_f = jnp.pad(x_p.reshape(nblk * nb, cin, hp * wp),
                  ((0, 0), (0, 0), (lead, seg - lead - hp * wp)))
    x_f = x_f.reshape(nblk, nb, cin, seg).transpose(0, 2, 1, 3)
    x_f = x_f.reshape(nblk, cin, nb * seg)

    # Interior-mask row (also the bias carrier of the first-stage 1x1 convs).
    rr = jnp.arange(hp * wp) // wp
    cc = jnp.arange(hp * wp) % wp
    m = ((rr >= pad) & (rr < pad + h) & (cc >= pad) & (cc < pad + w))
    m = jnp.pad(m.astype(jnp.float32), (lead, seg - lead - hp * wp))
    mask = jnp.broadcast_to(jnp.tile(m, (nb,)), (nblk, 1, nb * seg))

    x_ext = jnp.concatenate([x_f, mask], axis=1)        # (nblk, cin+1, nb*seg)

    c2m = int(params["c2a_w"].shape[0])
    c3m = int(params["c3a_w"].shape[0])
    cpad = _round_up(max(c2m, c3m), 8)
    bcol = max(cin + 1, 25 * cpad)
    w_all, (c1o, c2o, c3o, c4o) = _pack_weights(params, cin, cpad, bcol)
    ctot = c1o + c2o + c3o + c4o
    ca = c1o + 2 * cpad
    nbt = nb * tout

    kernel = functools.partial(
        _inception_kernel, cin=cin, cpad=cpad, wp=wp, seg=seg, base=base,
        t=tout, nb=nb, c1o=c1o, c2o=c2o, c3o=c3o, c4o=c4o, bcol=bcol)

    cost = pl.CostEstimate(
        flops=nblk * (2 * ca * (cin + 1) * nb * seg
                      + 2 * c2o * 9 * cpad * nbt
                      + 2 * c3o * 25 * cpad * nbt
                      + 2 * c4o * cin * nbt),
        transcendentals=0,
        bytes_accessed=int(x_ext.size * 4 + w_all.size * 4
                           + nblk * ctot * nbt * 4))

    out = pl.pallas_call(
        kernel,
        out_shape=jax.ShapeDtypeStruct((nblk, ctot, nbt), jnp.float32),
        grid=(nblk,),
        in_specs=[
            pl.BlockSpec((None, cin + 1, nb * seg), lambda b: (b, 0, 0)),
            pl.BlockSpec(w_all.shape, lambda b: (0, 0)),
        ],
        out_specs=pl.BlockSpec((None, ctot, nbt), lambda b: (b, 0, 0)),
        compiler_params=pltpu.CompilerParams(
            dimension_semantics=("parallel",)),
        cost_estimate=cost,
    )(x_ext, w_all)

    # (nblk, ctot, nb*tout) -> (N, Ctot, H, W): columns are already channel-
    # major and row-ordered, so only a small reshape/crop is needed.
    out = out.reshape(nblk, ctot, nb, tout).transpose(0, 2, 1, 3)
    out = out.reshape(nblk * nb, ctot, tout)[:n]
    return out[:, :, :h * wp].reshape(n, ctot, h, wp)[:, :, :, :w]


# ---------------------------------------------------------------------------
# Pure-JAX reference (mirrors the torch module exactly, NCHW / OIHW)
# ---------------------------------------------------------------------------
def _relu(v):
    return jnp.maximum(v, 0.0)


def _conv_relu(x, w, b, pad):
    y = lax.conv_general_dilated(
        x, w.astype(jnp.float32), window_strides=(1, 1),
        padding=[(pad, pad), (pad, pad)],
        dimension_numbers=("NCHW", "OIHW", "NCHW"),
        precision=lax.Precision.HIGHEST)
    return _relu(y + b.reshape(1, -1, 1, 1))


def inception_reference(x_nchw, params):
    x = x_nchw.astype(jnp.float32)
    out1 = _conv_relu(x, params["c1_w"], params["c1_b"], 0)
    out2 = _conv_relu(_conv_relu(x, params["c2a_w"], params["c2a_b"], 0),
                      params["c2b_w"], params["c2b_b"], 1)
    out3 = _conv_relu(_conv_relu(x, params["c3a_w"], params["c3a_b"], 0),
                      params["c3b_w"], params["c3b_b"], 2)
    pooled = lax.reduce_window(x, -jnp.inf, lax.max,
                               window_dimensions=(1, 1, 3, 3),
                               window_strides=(1, 1, 1, 1),
                               padding=[(0, 0), (0, 0), (1, 1), (1, 1)])
    out4 = _conv_relu(_relu(pooled), params["c4_w"], params["c4_b"], 0)
    return jnp.concatenate([out1, out2, out3, out4], axis=1)


# ---------------------------------------------------------------------------
# Main
# ---------------------------------------------------------------------------
if __name__ == "__main__":
    # Inception(channels1=(4,8), channels2=(4,6,8), channels3=(4,6,8),
    #           channels4=(4,8)) -> 32 output channels.
    cin = 4
    ch1 = (cin, 8)
    ch2 = (cin, 6, 8)
    ch3 = (cin, 6, 8)
    ch4 = (cin, 8)

    key = jax.random.PRNGKey(0)
    ks = jax.random.split(key, 13)

    def w_init(k, shape):
        return (0.1 * jax.random.normal(k, shape)).astype(jnp.float32)

    # Parameters in the torch Conv2d layout: weight (Cout, Cin, K, K), bias (Cout,).
    params = {
        "c1_w": w_init(ks[0], (ch1[1], ch1[0], 1, 1)),  "c1_b": w_init(ks[1], (ch1[1],)),
        "c2a_w": w_init(ks[2], (ch2[1], ch2[0], 1, 1)), "c2a_b": w_init(ks[3], (ch2[1],)),
        "c2b_w": w_init(ks[4], (ch2[2], ch2[1], 3, 3)), "c2b_b": w_init(ks[5], (ch2[2],)),
        "c3a_w": w_init(ks[6], (ch3[1], ch3[0], 1, 1)), "c3a_b": w_init(ks[7], (ch3[1],)),
        "c3b_w": w_init(ks[8], (ch3[2], ch3[1], 5, 5)), "c3b_b": w_init(ks[9], (ch3[2],)),
        "c4_w": w_init(ks[10], (ch4[1], ch4[0], 1, 1)), "c4_b": w_init(ks[11], (ch4[1],)),
    }

    x = jax.random.normal(ks[12], (2, cin, 16, 16), dtype=jnp.float32)  # NCHW

    out = jax.block_until_ready(jax.jit(inception_forward)(x, params))
    ref = jax.block_until_ready(inception_reference(x, params))

    assert out.shape == (2, 32, 16, 16), out.shape
    # Branches 2/3 use bf16 im2col patches/weights with f32 accumulation, so
    # the tolerance vs the f32 reference is loosened (per review guidance).
    max_err = float(jnp.max(jnp.abs(out - ref)))
    assert jnp.allclose(out, ref, rtol=2e-2, atol=2e-2), max_err

    print("KERNEL_OK")
</pallas_src>

<mosaic_0001>
module attributes {stable_mosaic.version = 11 : i64} {
  func.func @_inception_kernel(%arg0: i32, %arg1: memref<1x5x640xf32, #tpu.memory_space<vmem>>, %arg2: memref<48x201xf32, #tpu.memory_space<vmem>>, %arg3: memref<1x32x384xf32, #tpu.memory_space<vmem>>) attributes {dimension_semantics = [#tpu.dimension_semantics<parallel>], iteration_bounds = array<i64: 2>, scalar_prefetch = 0 : i64, scratch_operands = 0 : i64, tpu.core_type = #tpu.core_type<tc>, window_params = [{transform_indices = @transform_0, window_bounds = array<i64: 1, 5, 640>}, {pipeline_mode = #tpu.pipeline_mode<synchronous>, transform_indices = @transform_1, window_bounds = array<i64: 48, 201>}, {transform_indices = @transform_2, window_bounds = array<i64: 1, 32, 384>}]} {
    %c0 = arith.constant 0 : index
    %c0_0 = arith.constant 0 : index
    %c0_1 = arith.constant 0 : index
    %0 = vector.load %arg1[%c0, %c0_0, %c0_1] : memref<1x5x640xf32, #tpu.memory_space<vmem>>, vector<1x5x640xf32>
    %1 = vector.shape_cast %0 : vector<1x5x640xf32> to vector<5x640xf32>
    %c0_2 = arith.constant 0 : index
    %c0_3 = arith.constant 0 : index
    %2 = vector.load %arg2[%c0_2, %c0_3] : memref<48x201xf32, #tpu.memory_space<vmem>>, vector<24x5xf32>
    %cst = arith.constant dense<0.000000e+00> : vector<24x640xf32>
    %3 = tpu.matmul %2, %1, %cst {dimension_numbers = #tpu.dot_dimension_numbers<[1], [0], [0], [1], [0, 0, 1, 1], [], []>} : vector<24x5xf32>, vector<5x640xf32>, vector<24x640xf32> -> vector<24x640xf32>
    %cst_4 = arith.constant 0.000000e+00 : f32
    %4 = vector.broadcast %cst_4 : f32 to vector<24x640xf32>
    %5 = arith.maximumf %3, %4 : vector<24x640xf32>
    %6 = vector.extract_strided_slice %5 {offsets = [0, 0], sizes = [8, 640], strides = [1, 1]} : vector<24x640xf32> to vector<8x640xf32>
    %7 = vector.extract_strided_slice %6 {offsets = [0, 128], sizes = [8, 384], strides = [1, 1]} : vector<8x640xf32> to vector<8x384xf32>
    %c0_5 = arith.constant 0 : index
    %c0_6 = arith.constant 0 : index
    %c0_7 = arith.constant 0 : index
    %8 = vector.load %arg3[%c0_5, %c0_6, %c0_7] : memref<1x32x384xf32, #tpu.memory_space<vmem>>, vector<1x8x384xf32>
    %9 = vector.shape_cast %8 : vector<1x8x384xf32> to vector<8x384xf32>
    %10 = vector.shape_cast %7 : vector<8x384xf32> to vector<1x8x384xf32>
    tpu.vector_store %arg3[%c0_5, %c0_6, %c0_7], %10 {strides = array<i32>} : memref<1x32x384xf32, #tpu.memory_space<vmem>>, vector<1x8x384xf32>,
    %11 = vector.extract_strided_slice %5 {offsets = [8, 0], sizes = [8, 640], strides = [1, 1]} : vector<24x640xf32> to vector<8x640xf32>
    %12 = arith.truncf %11 : vector<8x640xf32> to vector<8x640xbf16>
    %13 = vector.extract_strided_slice %12 {offsets = [0, 107], sizes = [8, 384], strides = [1, 1]} : vector<8x640xbf16> to vector<8x384xbf16>
    %14 = vector.extract_strided_slice %12 {offsets = [0, 108], sizes = [8, 384], strides = [1, 1]} : vector<8x640xbf16> to vector<8x384xbf16>
    %15 = vector.extract_strided_slice %12 {offsets = [0, 109], sizes = [8, 384], strides = [1, 1]} : vector<8x640xbf16> to vector<8x384xbf16>
    %16 = vector.extract_strided_slice %12 {offsets = [0, 127], sizes = [8, 384], strides = [1, 1]} : vector<8x640xbf16> to vector<8x384xbf16>
    %17 = vector.extract_strided_slice %12 {offsets = [0, 128], sizes = [8, 384], strides = [1, 1]} : vector<8x640xbf16> to vector<8x384xbf16>
    %18 = vector.extract_strided_slice %12 {offsets = [0, 129], sizes = [8, 384], strides = [1, 1]} : vector<8x640xbf16> to vector<8x384xbf16>
    %19 = vector.extract_strided_slice %12 {offsets = [0, 147], sizes = [8, 384], strides = [1, 1]} : vector<8x640xbf16> to vector<8x384xbf16>
    %20 = vector.extract_strided_slice %12 {offsets = [0, 148], sizes = [8, 384], strides = [1, 1]} : vector<8x640xbf16> to vector<8x384xbf16>
    %21 = vector.extract_strided_slice %12 {offsets = [0, 149], sizes = [8, 384], strides = [1, 1]} : vector<8x640xbf16> to vector<8x384xbf16>
    %22 = tpu.concatenate %13, %14, %15, %16, %17, %18, %19, %20, %21 in 0 : vector<8x384xbf16>, vector<8x384xbf16>, vector<8x384xbf16>, vector<8x384xbf16>, vector<8x384xbf16>, vector<8x384xbf16>, vector<8x384xbf16>, vector<8x384xbf16>, vector<8x384xbf16> -> vector<72x384xbf16>
    %c24 = arith.constant 24 : index
    %c0_8 = arith.constant 0 : index
    %23 = vector.load %arg2[%c24, %c0_8] : memref<48x201xf32, #tpu.memory_space<vmem>>, vector<8x72xf32>
    %24 = arith.truncf %23 : vector<8x72xf32> to vector<8x72xbf16>
    %c24_9 = arith.constant 24 : index
    %c200 = arith.constant 200 : index
    %25 = vector.load %arg2[%c24_9, %c200] : memref<48x201xf32, #tpu.memory_space<vmem>>, vector<8x1xf32>
    %cst_10 = arith.constant dense<0.000000e+00> : vector<8x384xf32>
    %26 = tpu.matmul %24, %22, %cst_10 {dimension_numbers = #tpu.dot_dimension_numbers<[1], [0], [0], [1], [0, 0, 1, 1], [], []>} : vector<8x72xbf16>, vector<72x384xbf16>, vector<8x384xf32> -> vector<8x384xf32>
    %27 = vector.broadcast %25 : vector<8x1xf32> to vector<8x384xf32>
    %28 = arith.addf %26, %27 : vector<8x384xf32>
    %cst_11 = arith.constant 0.000000e+00 : f32
    %29 = vector.broadcast %cst_11 : f32 to vector<8x384xf32>
    %30 = arith.maximumf %28, %29 : vector<8x384xf32>
    %c0_12 = arith.constant 0 : index
    %c8 = arith.constant 8 : index
    %c0_13 = arith.constant 0 : index
    %31 = vector.load %arg3[%c0_12, %c8, %c0_13] : memref<1x32x384xf32, #tpu.memory_space<vmem>>, vector<1x8x384xf32>
    %32 = vector.shape_cast %31 : vector<1x8x384xf32> to vector<8x384xf32>
    %33 = vector.shape_cast %30 : vector<8x384xf32> to vector<1x8x384xf32>
    tpu.vector_store %arg3[%c0_12, %c8, %c0_13], %33 {strides = array<i32>} : memref<1x32x384xf32, #tpu.memory_space<vmem>>, vector<1x8x384xf32>,
    %34 = vector.extract_strided_slice %5 {offsets = [16, 0], sizes = [8, 640], strides = [1, 1]} : vector<24x640xf32> to vector<8x640xf32>
    %35 = arith.truncf %34 : vector<8x640xf32> to vector<8x640xbf16>
    %36 = vector.extract_strided_slice %35 {offsets = [0, 86], sizes = [8, 384], strides = [1, 1]} : vector<8x640xbf16> to vector<8x384xbf16>
    %37 = vector.extract_strided_slice %35 {offsets = [0, 87], sizes = [8, 384], strides = [1, 1]} : vector<8x640xbf16> to vector<8x384xbf16>
    %38 = vector.extract_strided_slice %35 {offsets = [0, 88], sizes = [8, 384], strides = [1, 1]} : vector<8x640xbf16> to vector<8x384xbf16>
    %39 = vector.extract_strided_slice %35 {offsets = [0, 89], sizes = [8, 384], strides = [1, 1]} : vector<8x640xbf16> to vector<8x384xbf16>
    %40 = vector.extract_strided_slice %35 {offsets = [0, 90], sizes = [8, 384], strides = [1, 1]} : vector<8x640xbf16> to vector<8x384xbf16>
    %41 = vector.extract_strided_slice %35 {offsets = [0, 106], sizes = [8, 384], strides = [1, 1]} : vector<8x640xbf16> to vector<8x384xbf16>
    %42 = vector.extract_strided_slice %35 {offsets = [0, 107], sizes = [8, 384], strides = [1, 1]} : vector<8x640xbf16> to vector<8x384xbf16>
    %43 = vector.extract_strided_slice %35 {offsets = [0, 108], sizes = [8, 384], strides = [1, 1]} : vector<8x640xbf16> to vector<8x384xbf16>
    %44 = vector.extract_strided_slice %35 {offsets = [0, 109], sizes = [8, 384], strides = [1, 1]} : vector<8x640xbf16> to vector<8x384xbf16>
    %45 = vector.extract_strided_slice %35 {offsets = [0, 110], sizes = [8, 384], strides = [1, 1]} : vector<8x640xbf16> to vector<8x384xbf16>
    %46 = vector.extract_strided_slice %35 {offsets = [0, 126], sizes = [8, 384], strides = [1, 1]} : vector<8x640xbf16> to vector<8x384xbf16>
    %47 = vector.extract_strided_slice %35 {offsets = [0, 127], sizes = [8, 384], strides = [1, 1]} : vector<8x640xbf16> to vector<8x384xbf16>
    %48 = vector.extract_strided_slice %35 {offsets = [0, 128], sizes = [8, 384], strides = [1, 1]} : vector<8x640xbf16> to vector<8x384xbf16>
    %49 = vector.extract_strided_slice %35 {offsets = [0, 129], sizes = [8, 384], strides = [1, 1]} : vector<8x640xbf16> to vector<8x384xbf16>
    %50 = vector.extract_strided_slice %35 {offsets = [0, 130], sizes = [8, 384], strides = [1, 1]} : vector<8x640xbf16> to vector<8x384xbf16>
    %51 = vector.extract_strided_slice %35 {offsets = [0, 146], sizes = [8, 384], strides = [1, 1]} : vector<8x640xbf16> to vector<8x384xbf16>
    %52 = vector.extract_strided_slice %35 {offsets = [0, 147], sizes = [8, 384], strides = [1, 1]} : vector<8x640xbf16> to vector<8x384xbf16>
    %53 = vector.extract_strided_slice %35 {offsets = [0, 148], sizes = [8, 384], strides = [1, 1]} : vector<8x640xbf16> to vector<8x384xbf16>
    %54 = vector.extract_strided_slice %35 {offsets = [0, 149], sizes = [8, 384], strides = [1, 1]} : vector<8x640xbf16> to vector<8x384xbf16>
    %55 = vector.extract_strided_slice %35 {offsets = [0, 150], sizes = [8, 384], strides = [1, 1]} : vector<8x640xbf16> to vector<8x384xbf16>
    %56 = vector.extract_strided_slice %35 {offsets = [0, 166], sizes = [8, 384], strides = [1, 1]} : vector<8x640xbf16> to vector<8x384xbf16>
    %57 = vector.extract_strided_slice %35 {offsets = [0, 167], sizes = [8, 384], strides = [1, 1]} : vector<8x640xbf16> to vector<8x384xbf16>
    %58 = vector.extract_strided_slice %35 {offsets = [0, 168], sizes = [8, 384], strides = [1, 1]} : vector<8x640xbf16> to vector<8x384xbf16>
    %59 = vector.extract_strided_slice %35 {offsets = [0, 169], sizes = [8, 384], strides = [1, 1]} : vector<8x640xbf16> to vector<8x384xbf16>
    %60 = vector.extract_strided_slice %35 {offsets = [0, 170], sizes = [8, 384], strides = [1, 1]} : vector<8x640xbf16> to vector<8x384xbf16>
    %61 = tpu.concatenate %36, %37, %38, %39, %40, %41, %42, %43, %44, %45, %46, %47, %48, %49, %50, %51 in 0 : vector<8x384xbf16>, vector<8x384xbf16>, vector<8x384xbf16>, vector<8x384xbf16>, vector<8x384xbf16>, vector<8x384xbf16>, vector<8x384xbf16>, vector<8x384xbf16>, vector<8x384xbf16>, vector<8x384xbf16>, vector<8x384xbf16>, vector<8x384xbf16>, vector<8x384xbf16>, vector<8x384xbf16>, vector<8x384xbf16>, vector<8x384xbf16> -> vector<128x384xbf16>
    %62 = tpu.concatenate %52, %53, %54, %55, %56, %57, %58, %59, %60 in 0 : vector<8x384xbf16>, vector<8x384xbf16>, vector<8x384xbf16>, vector<8x384xbf16>, vector<8x384xbf16>, vector<8x384xbf16>, vector<8x384xbf16>, vector<8x384xbf16>, vector<8x384xbf16> -> vector<72x384xbf16>
    %63 = tpu.concatenate %61, %62 in 0 : vector<128x384xbf16>, vector<72x384xbf16> -> vector<200x384xbf16>
    %c32 = arith.constant 32 : index
    %c0_14 = arith.constant 0 : index
    %64 = vector.load %arg2[%c32, %c0_14] : memref<48x201xf32, #tpu.memory_space<vmem>>, vector<8x200xf32>
    %65 = arith.truncf %64 : vector<8x200xf32> to vector<8x200xbf16>
    %c32_15 = arith.constant 32 : index
    %c200_16 = arith.constant 200 : index
    %66 = vector.load %arg2[%c32_15, %c200_16] : memref<48x201xf32, #tpu.memory_space<vmem>>, vector<8x1xf32>
    %cst_17 = arith.constant dense<0.000000e+00> : vector<8x384xf32>
    %67 = tpu.matmul %65, %63, %cst_17 {dimension_numbers = #tpu.dot_dimension_numbers<[1], [0], [0], [1], [0, 0, 1, 1], [], []>} : vector<8x200xbf16>, vector<200x384xbf16>, vector<8x384xf32> -> vector<8x384xf32>
    %68 = vector.broadcast %66 : vector<8x1xf32> to vector<8x384xf32>
    %69 = arith.addf %67, %68 : vector<8x384xf32>
    %cst_18 = arith.constant 0.000000e+00 : f32
    %70 = vector.broadcast %cst_18 : f32 to vector<8x384xf32>
    %71 = arith.maximumf %69, %70 : vector<8x384xf32>
    %c0_19 = arith.constant 0 : index
    %c16 = arith.constant 16 : index
    %c0_20 = arith.constant 0 : index
    %72 = vector.load %arg3[%c0_19, %c16, %c0_20] : memref<1x32x384xf32, #tpu.memory_space<vmem>>, vector<1x8x384xf32>
    %73 = vector.shape_cast %72 : vector<1x8x384xf32> to vector<8x384xf32>
    %74 = vector.shape_cast %71 : vector<8x384xf32> to vector<1x8x384xf32>
    tpu.vector_store %arg3[%c0_19, %c16, %c0_20], %74 {strides = array<i32>} : memref<1x32x384xf32, #tpu.memory_space<vmem>>, vector<1x8x384xf32>,
    %75 = vector.extract_strided_slice %1 {offsets = [0, 0], sizes = [4, 640], strides = [1, 1]} : vector<5x640xf32> to vector<4x640xf32>
    %76 = vector.extract_strided_slice %75 {offsets = [0, 107], sizes = [4, 384], strides = [1, 1]} : vector<4x640xf32> to vector<4x384xf32>
    %77 = vector.extract_strided_slice %1 {offsets = [0, 0], sizes = [4, 640], strides = [1, 1]} : vector<5x640xf32> to vector<4x640xf32>
    %78 = vector.extract_strided_slice %77 {offsets = [0, 108], sizes = [4, 384], strides = [1, 1]} : vector<4x640xf32> to vector<4x384xf32>
    %79 = vector.extract_strided_slice %1 {offsets = [0, 0], sizes = [4, 640], strides = [1, 1]} : vector<5x640xf32> to vector<4x640xf32>
    %80 = vector.extract_strided_slice %79 {offsets = [0, 109], sizes = [4, 384], strides = [1, 1]} : vector<4x640xf32> to vector<4x384xf32>
    %81 = vector.extract_strided_slice %1 {offsets = [0, 0], sizes = [4, 640], strides = [1, 1]} : vector<5x640xf32> to vector<4x640xf32>
    %82 = vector.extract_strided_slice %81 {offsets = [0, 127], sizes = [4, 384], strides = [1, 1]} : vector<4x640xf32> to vector<4x384xf32>
    %83 = vector.extract_strided_slice %1 {offsets = [0, 0], sizes = [4, 640], strides = [1, 1]} : vector<5x640xf32> to vector<4x640xf32>
    %84 = vector.extract_strided_slice %83 {offsets = [0, 128], sizes = [4, 384], strides = [1, 1]} : vector<4x640xf32> to vector<4x384xf32>
    %85 = vector.extract_strided_slice %1 {offsets = [0, 0], sizes = [4, 640], strides = [1, 1]} : vector<5x640xf32> to vector<4x640xf32>
    %86 = vector.extract_strided_slice %85 {offsets = [0, 129], sizes = [4, 384], strides = [1, 1]} : vector<4x640xf32> to vector<4x384xf32>
    %87 = vector.extract_strided_slice %1 {offsets = [0, 0], sizes = [4, 640], strides = [1, 1]} : vector<5x640xf32> to vector<4x640xf32>
    %88 = vector.extract_strided_slice %87 {offsets = [0, 147], sizes = [4, 384], strides = [1, 1]} : vector<4x640xf32> to vector<4x384xf32>
    %89 = vector.extract_strided_slice %1 {offsets = [0, 0], sizes = [4, 640], strides = [1, 1]} : vector<5x640xf32> to vector<4x640xf32>
    %90 = vector.extract_strided_slice %89 {offsets = [0, 148], sizes = [4, 384], strides = [1, 1]} : vector<4x640xf32> to vector<4x384xf32>
    %91 = vector.extract_strided_slice %1 {offsets = [0, 0], sizes = [4, 640], strides = [1, 1]} : vector<5x640xf32> to vector<4x640xf32>
    %92 = vector.extract_strided_slice %91 {offsets = [0, 149], sizes = [4, 384], strides = [1, 1]} : vector<4x640xf32> to vector<4x384xf32>
    %93 = arith.maximumf %76, %78 : vector<4x384xf32>
    %94 = arith.maximumf %93, %80 : vector<4x384xf32>
    %95 = arith.maximumf %94, %82 : vector<4x384xf32>
    %96 = arith.maximumf %95, %84 : vector<4x384xf32>
    %97 = arith.maximumf %96, %86 : vector<4x384xf32>
    %98 = arith.maximumf %97, %88 : vector<4x384xf32>
    %99 = arith.maximumf %98, %90 : vector<4x384xf32>
    %100 = arith.maximumf %99, %92 : vector<4x384xf32>
    %cst_21 = arith.constant 0.000000e+00 : f32
    %101 = vector.broadcast %cst_21 : f32 to vector<4x384xf32>
    %102 = arith.maximumf %100, %101 : vector<4x384xf32>
    %c40 = arith.constant 40 : index
    %c0_22 = arith.constant 0 : index
    %103 = vector.load %arg2[%c40, %c0_22] : memref<48x201xf32, #tpu.memory_space<vmem>>, vector<8x4xf32>
    %c40_23 = arith.constant 40 : index
    %c200_24 = arith.constant 200 : index
    %104 = vector.load %arg2[%c40_23, %c200_24] : memref<48x201xf32, #tpu.memory_space<vmem>>, vector<8x1xf32>
    %cst_25 = arith.constant dense<0.000000e+00> : vector<8x384xf32>
    %105 = tpu.matmul %103, %102, %cst_25 {dimension_numbers = #tpu.dot_dimension_numbers<[1], [0], [0], [1], [0, 0, 1, 1], [], []>} : vector<8x4xf32>, vector<4x384xf32>, vector<8x384xf32> -> vector<8x384xf32>
    %106 = vector.broadcast %104 : vector<8x1xf32> to vector<8x384xf32>
    %107 = arith.addf %105, %106 : vector<8x384xf32>
    %cst_26 = arith.constant 0.000000e+00 : f32
    %108 = vector.broadcast %cst_26 : f32 to vector<8x384xf32>
    %109 = arith.maximumf %107, %108 : vector<8x384xf32>
    %c0_27 = arith.constant 0 : index
    %c24_28 = arith.constant 24 : index
    %c0_29 = arith.constant 0 : index
    %110 = vector.load %arg3[%c0_27, %c24_28, %c0_29] : memref<1x32x384xf32, #tpu.memory_space<vmem>>, vector<1x8x384xf32>
    %111 = vector.shape_cast %110 : vector<1x8x384xf32> to vector<8x384xf32>
    %112 = vector.shape_cast %109 : vector<8x384xf32> to vector<1x8x384xf32>
    tpu.vector_store %arg3[%c0_27, %c24_28, %c0_29], %112 {strides = array<i32>} : memref<1x32x384xf32, #tpu.memory_space<vmem>>, vector<1x8x384xf32>,
    return
  }
  func.func @transform_0(%arg0: i32) -> (i32, i32, i32) {
    %c0_i32 = arith.constant 0 : i32
    %c0_i32_0 = arith.constant 0 : i32
    %c0_i32_1 = arith.constant 0 : i32
    return %arg0, %c0_i32, %c0_i32_0 : i32, i32, i32
  }
  func.func @transform_1(%arg0: i32) -> (i32, i32) {
    %c0_i32 = arith.constant 0 : i32
    %c0_i32_0 = arith.constant 0 : i32
    %c0_i32_1 = arith.constant 0 : i32
    return %c0_i32, %c0_i32_0 : i32, i32
  }
  func.func @transform_2(%arg0: i32) -> (i32, i32, i32) {
    %c0_i32 = arith.constant 0 : i32
    %c0_i32_0 = arith.constant 0 : i32
    %c0_i32_1 = arith.constant 0 : i32
    return %arg0, %c0_i32, %c0_i32_0 : i32, i32, i32
  }
}

</mosaic_0001>

<llo_original>
// kernel: inception_forward.1
$region0: #{inception_forward.1}
  #allocation0 [shape = 'u32[]', space=smem, size = 0x4, offset = 0x4, fixed_abs, tag = 'smem constant byte address 0x4 - core index']
  #allocation1 [shape = 'u32[144,128]{1,0:T(1,128)}', space=vmem, size = 0x12000, scoped, tag = 'internal scratch']
  %s0 = inlined_call_operand.vmem [shape: f32[2,5,640], index: 0, kind: input, shape index: {}]
  %s1 = inlined_call_operand.vmem [shape: f32[48,201], index: 1, kind: input, shape index: {}]
  %s2 = inlined_call_operand.vmem [shape: f32[2,32,384], index: 2, kind: output, shape index: {}]
  %s3 = sld [smem:[#allocation0]]
  $region41: #{inception_forward.1} parent=0
    _
  %s5 = ssub.s32 1, %s3
  %s6 = scalar_select 0, %s5, %s3
  loop: start=0, step=1, limit=4
  $region2: #{inception_forward.1} parent=0 // loop_pre_header
    _
  $region3: #{inception_forward.1} parent=0 // loop_header
    %s8 = sphi 0, %s12
    %p9 = scmp.ge.s32.totalorder %s8, 4
    %s18 = sphi 0, %s20
    %s21 = sphi 0, %s18
    %s22 = sphi 0, %s21
    %s38 = sphi 0, %s22
    %s42 = sphi 0, %s42
    %s44 = sphi 0, %s42
    %s45 = sphi 0, %s44
    %s59 = sphi 0, %s45
    %s65 = sphi 0, %s67
    %s68 = sphi 0, %s65
    %s69 = sphi 0, %s68
    %s85 = sphi 0, %s69
  $region4: #{inception_forward.1} parent=0 // loop_header_branch
    %11 = sbr.rel (%p9) target = $region8
  $region5: #{inception_forward.1} parent=0 // loop_body
    %s13 = ssub.s32 %s8, 1
    %s14 = ssub.s32 %s8, 2
    %s15 = sadd.s32 %s8, 1
    %s16 = ssub.s32 %s8, %s15
    %p17 = scmp.eq.s32.totalorder %s16, 0
    %s19 = sadd.s32 %s18, 1
    %s20 = scalar_select %p17, %s18, %s19
    %p23 = pneg %p17
    %p24 = scmp.eq.s32.totalorder %s8, 1
    %p25 = por %p23, %p24
    %p26 = scmp.ne.s32.totalorder %s18, %s21
    %p27 = scmp.eq.s32.totalorder %s8, 0
    %p28 = por %p26, %p27
    %p29 = scmp.ne.s32.totalorder %s18, %s21
    %p30 = scmp.eq.s32.totalorder %s13, 1
    %p31 = por %p29, %p30
    %p32 = scmp.ne.s32.totalorder %s21, %s22
    %p33 = scmp.eq.s32.totalorder %s13, 0
    %p34 = por %p32, %p33
    %p35 = scmp.ne.s32.totalorder %s21, %s22
    %p36 = scmp.eq.s32.totalorder %s14, 1
    %p37 = por %p35, %p36
    %p39 = scmp.ne.s32.totalorder %s22, %s38
    %p40 = scmp.eq.s32.totalorder %s14, 0
    %p41 = por %p39, %p40
    %s43 = sadd.s32 %s42, 1
    %p46 = scmp.eq.s32.totalorder %s8, 1
    %p47 = scmp.ne.s32.totalorder %s42, %s44
    %p48 = scmp.eq.s32.totalorder %s8, 0
    %p49 = por %p47, %p48
    %p50 = scmp.ne.s32.totalorder %s42, %s44
    %p51 = scmp.eq.s32.totalorder %s13, 1
    %p52 = por %p50, %p51
    %p53 = scmp.ne.s32.totalorder %s44, %s45
    %p54 = scmp.eq.s32.totalorder %s13, 0
    %p55 = por %p53, %p54
    %p56 = scmp.ne.s32.totalorder %s44, %s45
    %p57 = scmp.eq.s32.totalorder %s14, 1
    %p58 = por %p56, %p57
    %p60 = scmp.ne.s32.totalorder %s45, %s59
    %p61 = scmp.eq.s32.totalorder %s14, 0
    %p62 = por %p60, %p61
    %s63 = ssub.s32 %s8, %s15
    %p64 = scmp.eq.s32.totalorder %s63, 0
    %s66 = sadd.s32 %s65, 1
    %s67 = scalar_select %p64, %s65, %s66
    %p70 = pneg %p64
    %p71 = scmp.eq.s32.totalorder %s8, 1
    %p72 = por %p70, %p71
    %p73 = scmp.ne.s32.totalorder %s65, %s68
    %p74 = scmp.eq.s32.totalorder %s8, 0
    %p75 = por %p73, %p74
    %p76 = scmp.ne.s32.totalorder %s65, %s68
    %p77 = scmp.eq.s32.totalorder %s13, 1
    %p78 = por %p76, %p77
    %p79 = scmp.ne.s32.totalorder %s68, %s69
    %p80 = scmp.eq.s32.totalorder %s13, 0
    %p81 = por %p79, %p80
    %p82 = scmp.ne.s32.totalorder %s68, %s69
    %p83 = scmp.eq.s32.totalorder %s14, 1
    %p84 = por %p82, %p83
    %p86 = scmp.ne.s32.totalorder %s69, %s85
    %p87 = scmp.eq.s32.totalorder %s14, 0
    %p88 = por %p86, %p87
    %p89 = scmp.le.s32.totalorder 1, %s8
    %p90 = scmp.lt.s32.totalorder %s8, 3
    %p91 = pnand %p89, %p90
    %p92 = pneg %p91
    // Predicated region
    $region9: #{inception_forward.1} parent=5 // pred_check
      _
    $region10: #{inception_forward.1} parent=5 // pred_check_branch
      %94 = sbr.rel (%p91) target = $region12
    $region11: #{inception_forward.1} parent=5 // pred_region
      %s95 = ssub.s32 %s8, 1
      // Predicated region
      $region13: #{inception_forward.1} parent=11 // pred_check
        %p96 = pneg %p55
      $region14: #{inception_forward.1} parent=11 // pred_check_branch
        %98 = sbr.rel (%p96) target = $region16
      $region15: #{inception_forward.1} parent=11 // pred_region
        _
      $region16: #{inception_forward.1} parent=11 // pred_fallthru
        _
    $region12: #{inception_forward.1} parent=5 // pred_fallthru
      _
    %p99 = scmp.lt.s32.totalorder %s8, 2
    // Predicated region
    $region17: #{inception_forward.1} parent=5 // pred_check
      %p100 = pneg %p99
    $region18: #{inception_forward.1} parent=5 // pred_check_branch
      %102 = sbr.rel (%p100) target = $region20
    $region19: #{inception_forward.1} parent=5 // pred_region
      // Predicated region
      $region21: #{inception_forward.1} parent=19 // pred_check
        %p103 = pneg %p28
      $region22: #{inception_forward.1} parent=19 // pred_check_branch
        %105 = sbr.rel (%p103) target = $region24
      $region23: #{inception_forward.1} parent=19 // pred_region
        %p106 = scmp.lt.s32.totalorder %s8, 1
        %s107 = scalar_select %p106, %s8, 1
        %s108 = smul.addr %s107, 5
        %s109 = smul.addr %s108, 8
        %s110 = scalar_lea.vmem %s0, %s109
      $region24: #{inception_forward.1} parent=19 // pred_fallthru
        _
    $region20: #{inception_forward.1} parent=5 // pred_fallthru
      _
    %p111 = scmp.le.s32.totalorder 1, %s8
    %p112 = scmp.lt.s32.totalorder %s8, 3
    %p113 = pnand %p111, %p112
    %p114 = pneg %p113
    // Predicated region
    $region25: #{inception_forward.1} parent=5 // pred_check
      _
    $region26: #{inception_forward.1} parent=5 // pred_check_branch
      %116 = sbr.rel (%p113) target = $region28
    $region27: #{inception_forward.1} parent=5 // pred_region
      %s117 = ssub.s32 %s8, 1
      %p118 = scmp.lt.s32.totalorder %s13, 1
      %s119 = scalar_select %p118, %s13, 1
      %s120 = smul.addr %s119, 5
      %s121 = smul.addr %s120, 8
      %s122 = scalar_lea.vmem %s0, %s121
      %p123 = pneg %p34
      %p124 = pneg %p31
      %p125 = pneg %p55
      %p126 = pneg %p52
      %p127 = pneg %p81
      %p128 = pneg %p78
      %p129 = scmp.lt.s32.totalorder %s13, 1
      %s130 = scalar_select %p129, %s13, 1
      %s131 = smul.addr %s130, 12
      %s132 = smul.addr %s131, 8
      %s133 = scalar_lea.vmem %s2, %s132
      %p134 = scmp.lt.s32.totalorder %s13, 1
      %s135 = scalar_select %p134, %s13, 1
      %s136 = smul.addr %s135, 5
      %s137 = smul.addr %s136, 8
      %s138 = scalar_lea.vmem %s0, %s137
      %p139 = scmp.lt.s32.totalorder %s13, 1
      %s140 = scalar_select %p139, %s13, 1
      %s141 = smul.addr %s140, 12
      %s142 = smul.addr %s141, 8
      %s143 = scalar_lea.vmem %s2, %s142
      %v145 = vld [vmem:[%s138] sm:$0x1f]
      %v146 = vld [vmem:[%s138 + $0x8] sm:$0x1f]
      %v147 = vld [vmem:[%s138 + $0x10] sm:$0x1f]
      %v148 = vld [vmem:[%s138 + $0x18] sm:$0x1f]
      %v149 = vld [vmem:[%s138 + $0x20] sm:$0x1f]
      %v150 = vld [vmem:[%s1] sm:$0xff]
      %v151 = vld [vmem:[%s1 + $0x10] sm:$0xff]
      %v152 = vld [vmem:[%s1 + $0x20] sm:$0xff]
      %vm153 = vcmask 39936
      %v155 = vsel %vm153, %v150, 0
      %v158 = vsel %vm153, %v151, 0
      %v161 = vsel %vm153, %v152, 0
      %vm163 = vcmask 1044480
      %v165 = vsel %vm163, %v145, 0
      %v168 = vsel %vm163, %v146, 0
      %v171 = vsel %vm163, %v147, 0
      %v174 = vsel %vm163, %v148, 0
      %v177 = vsel %vm163, %v149, 0
      %179 = vmatprep.subr.mxu0 %v168
      %180 = vmatpush1.msra.mxu0 %v165
      %181 = vmatprep.subr.mxu0 0.0
      %182 = vmatpush1.msra.mxu0 0.0
      %183 = vmatprep.subr.mxu0 0.0
      %184 = vmatpush1.msra.mxu0 0.0
      %185 = vmatprep.subr.mxu0 0.0
      %186 = vmatpush1.msra.mxu0 0.0
      %187 = vmatprep.subr.mxu0 0.0
      %188 = vmatpush1.msra.mxu0 0.0
      %189 = vmatprep.subr.mxu0 0.0
      %190 = vmatpush1.msra.mxu0 0.0
      %191 = vmatprep.subr.mxu0 0.0
      %192 = vmatpush1.msra.mxu0 0.0
      %193 = vmatprep.subr.mxu0 0.0
      %194 = vmatpush1.msra.mxu0 0.0
      %195 = vmatprep.subr.mxu0 0.0
      %196 = vmatpush1.msra.mxu0 0.0
      %197 = vmatprep.subr.mxu0 0.0
      %198 = vmatpush1.msra.mxu0 0.0
      %199 = vmatprep.subr.mxu0 0.0
      %200 = vmatpush1.msra.mxu0 0.0
      %201 = vmatprep.subr.mxu0 0.0
      %202 = vmatpush1.msra.mxu0 0.0
      %203 = vmatprep.subr.mxu0 0.0
      %204 = vmatpush1.msra.mxu0 0.0
      %205 = vmatprep.subr.mxu0 0.0
      %206 = vmatpush1.msra.mxu0 0.0
      %207 = vmatprep.subr.mxu0 0.0
      %208 = vmatpush1.msra.mxu0 0.0
      %209 = vmatprep.subr.mxu0 0.0
      %210 = vmatpush1.msra.mxu0 0.0
      %211 = vmatprep.subr.mxu0 0.0
      %212 = vmatpush1.msra.mxu0 0.0
      %213 = vmatprep.subr.mxu0 0.0
      %214 = vmatpush1.msra.mxu0 0.0
      %215 = vmatprep.subr.mxu0 0.0
      %216 = vmatpush1.msra.mxu0 0.0
      %217 = vmatprep.subr.mxu0 0.0
      %218 = vmatpush1.msra.mxu0 0.0
      %219 = vmatprep.subr.mxu0 0.0
      %220 = vmatpush1.msra.mxu0 0.0
      %221 = vmatprep.subr.mxu0 0.0
      %222 = vmatpush1.msra.mxu0 0.0
      %223 = vmatprep.subr.mxu0 0.0
      %224 = vmatpush1.msra.mxu0 0.0
      %225 = vmatprep.subr.mxu0 0.0
      %226 = vmatpush1.msra.mxu0 0.0
      %227 = vmatprep.subr.mxu0 0.0
      %228 = vmatpush1.msra.mxu0 0.0
      %229 = vmatprep.subr.mxu0 0.0
      %230 = vmatpush1.msra.mxu0 0.0
      %231 = vmatprep.subr.mxu0 0.0
      %232 = vmatpush1.msra.mxu0 0.0
      %233 = vmatprep.subr.mxu0 0.0
      %234 = vmatpush1.msra.mxu0 0.0
      %235 = vmatprep.subr.mxu0 0.0
      %236 = vmatpush1.msra.mxu0 0.0
      %237 = vmatprep.subr.mxu0 0.0
      %238 = vmatpush1.msra.mxu0 0.0
      %239 = vmatprep.subr.mxu0 0.0
      %240 = vmatpush1.msra.mxu0 0.0
      %241 = vmatprep.subr.mxu0 0.0
      %242 = vmatpush1.msra.mxu0 0.0
      %243 = vmatprep.mubr.f32.mxu0 0.0
      %244 = vmatmul.mubr.f32.gmra.mrb[0].mxu0 %v155
      %v245 = vpop.f32.mrb[0].mxu0
      %v246 = vpop.f32.mrb[0].mxu0
      %v247 = vadd.f32 0.0, %v246
      %248 = vmatprep.mubr.f32.mxu0 0.0
      %249 = vmatmul.mubr.f32.gmra.mrb[0].mxu0 %v158
      %v250 = vpop.f32.mrb[0].mxu0
      %v251 = vadd.f32 0.0, %v250
      %v252 = vpop.f32.mrb[0].mxu0
      %v253 = vadd.f32 0.0, %v252
      %254 = vmatprep.mubr.f32.mxu0 0.0
      %255 = vmatmul.mubr.f32.gmra.mrb[0].mxu0 %v161
      %v256 = vpop.f32.mrb[0].mxu0
      %v257 = vadd.f32 0.0, %v256
      %v258 = vpop.f32.mrb[0].mxu0
      %v259 = vadd.f32 0.0, %v258
      %260 = vdwg.mxu0
      %261 = vmatprep.subr.mxu0 %v174
      %262 = vmatpush1.msra.mxu0 %v171
      %263 = vmatprep.subr.mxu0 0.0
      %264 = vmatpush1.msra.mxu0 0.0
      %265 = vmatprep.subr.mxu0 0.0
      %266 = vmatpush1.msra.mxu0 0.0
      %267 = vmatprep.subr.mxu0 0.0
      %268 = vmatpush1.msra.mxu0 0.0
      %269 = vmatprep.subr.mxu0 0.0
      %270 = vmatpush1.msra.mxu0 0.0
      %271 = vmatprep.subr.mxu0 0.0
      %272 = vmatpush1.msra.mxu0 0.0
      %273 = vmatprep.subr.mxu0 0.0
      %274 = vmatpush1.msra.mxu0 0.0
      %275 = vmatprep.subr.mxu0 0.0
      %276 = vmatpush1.msra.mxu0 0.0
      %277 = vmatprep.subr.mxu0 0.0
      %278 = vmatpush1.msra.mxu0 0.0
      %279 = vmatprep.subr.mxu0 0.0
      %280 = vmatpush1.msra.mxu0 0.0
      %281 = vmatprep.subr.mxu0 0.0
      %282 = vmatpush1.msra.mxu0 0.0
      %283 = vmatprep.subr.mxu0 0.0
      %284 = vmatpush1.msra.mxu0 0.0
      %285 = vmatprep.subr.mxu0 0.0
      %286 = vmatpush1.msra.mxu0 0.0
      %287 = vmatprep.subr.mxu0 0.0
      %288 = vmatpush1.msra.mxu0 0.0
      %289 = vmatprep.subr.mxu0 0.0
      %290 = vmatpush1.msra.mxu0 0.0
      %291 = vmatprep.subr.mxu0 0.0
      %292 = vmatpush1.msra.mxu0 0.0
      %293 = vmatprep.subr.mxu0 0.0
      %294 = vmatpush1.msra.mxu0 0.0
      %295 = vmatprep.subr.mxu0 0.0
      %296 = vmatpush1.msra.mxu0 0.0
      %297 = vmatprep.subr.mxu0 0.0
      %298 = vmatpush1.msra.mxu0 0.0
      %299 = vmatprep.subr.mxu0 0.0
      %300 = vmatpush1.msra.mxu0 0.0
      %301 = vmatprep.subr.mxu0 0.0
      %302 = vmatpush1.msra.mxu0 0.0
      %303 = vmatprep.subr.mxu0 0.0
      %304 = vmatpush1.msra.mxu0 0.0
      %305 = vmatprep.subr.mxu0 0.0
      %306 = vmatpush1.msra.mxu0 0.0
      %307 = vmatprep.subr.mxu0 0.0
      %308 = vmatpush1.msra.mxu0 0.0
      %309 = vmatprep.subr.mxu0 0.0
      %310 = vmatpush1.msra.mxu0 0.0
      %311 = vmatprep.subr.mxu0 0.0
      %312 = vmatpush1.msra.mxu0 0.0
      %313 = vmatprep.subr.mxu0 0.0
      %314 = vmatpush1.msra.mxu0 0.0
      %315 = vmatprep.subr.mxu0 0.0
      %316 = vmatpush1.msra.mxu0 0.0
      %317 = vmatprep.subr.mxu0 0.0
      %318 = vmatpush1.msra.mxu0 0.0
      %319 = vmatprep.subr.mxu0 0.0
      %320 = vmatpush1.msra.mxu0 0.0
      %321 = vmatprep.subr.mxu0 0.0
      %322 = vmatpush1.msra.mxu0 0.0
      %323 = vmatprep.subr.mxu0 0.0
      %324 = vmatpush1.msra.mxu0 0.0
      %325 = vmatprep.mubr.f32.mxu0 0.0
      %326 = vmatmul.mubr.f32.gmra.mrb[0].mxu0 %v155
      %v327 = vpop.f32.mrb[0].mxu0
      %v328 = vadd.f32 0.0, %v327
      %v329 = vpop.f32.mrb[0].mxu0
      %v330 = vadd.f32 0.0, %v329
      %331 = vmatprep.mubr.f32.mxu0 0.0
      %332 = vmatmul.mubr.f32.gmra.mrb[0].mxu0 %v158
      %v333 = vpop.f32.mrb[0].mxu0
      %v334 = vadd.f32 0.0, %v333
      %v335 = vpop.f32.mrb[0].mxu0
      %v336 = vadd.f32 0.0, %v335
      %337 = vmatprep.mubr.f32.mxu0 0.0
      %338 = vmatmul.mubr.f32.gmra.mrb[0].mxu0 %v161
      %v339 = vpop.f32.mrb[0].mxu0
      %v340 = vadd.f32 0.0, %v339
      %v341 = vpop.f32.mrb[0].mxu0
      %v342 = vadd.f32 0.0, %v341
      %343 = vdwg.mxu0
      %344 = vmatprep.subr.mxu0 0.0
      %345 = vmatpush1.msra.mxu0 %v177
      %346 = vmatprep.subr.mxu0 0.0
      %347 = vmatpush1.msra.mxu0 0.0
      %348 = vmatprep.subr.mxu0 0.0
      %349 = vmatpush1.msra.mxu0 0.0
      %350 = vmatprep.subr.mxu0 0.0
      %351 = vmatpush1.msra.mxu0 0.0
      %352 = vmatprep.subr.mxu0 0.0
      %353 = vmatpush1.msra.mxu0 0.0
      %354 = vmatprep.subr.mxu0 0.0
      %355 = vmatpush1.msra.mxu0 0.0
      %356 = vmatprep.subr.mxu0 0.0
      %357 = vmatpush1.msra.mxu0 0.0
      %358 = vmatprep.subr.mxu0 0.0
      %359 = vmatpush1.msra.mxu0 0.0
      %360 = vmatprep.subr.mxu0 0.0
      %361 = vmatpush1.msra.mxu0 0.0
      %362 = vmatprep.subr.mxu0 0.0
      %363 = vmatpush1.msra.mxu0 0.0
      %364 = vmatprep.subr.mxu0 0.0
      %365 = vmatpush1.msra.mxu0 0.0
      %366 = vmatprep.subr.mxu0 0.0
      %367 = vmatpush1.msra.mxu0 0.0
      %368 = vmatprep.subr.mxu0 0.0
      %369 = vmatpush1.msra.mxu0 0.0
      %370 = vmatprep.subr.mxu0 0.0
      %371 = vmatpush1.msra.mxu0 0.0
      %372 = vmatprep.subr.mxu0 0.0
      %373 = vmatpush1.msra.mxu0 0.0
      %374 = vmatprep.subr.mxu0 0.0
      %375 = vmatpush1.msra.mxu0 0.0
      %376 = vmatprep.subr.mxu0 0.0
      %377 = vmatpush1.msra.mxu0 0.0
      %378 = vmatprep.subr.mxu0 0.0
      %379 = vmatpush1.msra.mxu0 0.0
      %380 = vmatprep.subr.mxu0 0.0
      %381 = vmatpush1.msra.mxu0 0.0
      %382 = vmatprep.subr.mxu0 0.0
      %383 = vmatpush1.msra.mxu0 0.0
      %384 = vmatprep.subr.mxu0 0.0
      %385 = vmatpush1.msra.mxu0 0.0
      %386 = vmatprep.subr.mxu0 0.0
      %387 = vmatpush1.msra.mxu0 0.0
      %388 = vmatprep.subr.mxu0 0.0
      %389 = vmatpush1.msra.mxu0 0.0
      %390 = vmatprep.subr.mxu0 0.0
      %391 = vmatpush1.msra.mxu0 0.0
      %392 = vmatprep.subr.mxu0 0.0
      %393 = vmatpush1.msra.mxu0 0.0
      %394 = vmatprep.subr.mxu0 0.0
      %395 = vmatpush1.msra.mxu0 0.0
      %396 = vmatprep.subr.mxu0 0.0
      %397 = vmatpush1.msra.mxu0 0.0
      %398 = vmatprep.subr.mxu0 0.0
      %399 = vmatpush1.msra.mxu0 0.0
      %400 = vmatprep.subr.mxu0 0.0
      %401 = vmatpush1.msra.mxu0 0.0
      %402 = vmatprep.subr.mxu0 0.0
      %403 = vmatpush1.msra.mxu0 0.0
      %404 = vmatprep.subr.mxu0 0.0
      %405 = vmatpush1.msra.mxu0 0.0
      %406 = vmatprep.subr.mxu0 0.0
      %407 = vmatpush1.msra.mxu0 0.0
      %408 = vmatprep.mubr.f32.mxu0 0.0
      %409 = vmatmul.mubr.f32.gmra.mrb[0].mxu0 %v155
      %v410 = vpop.f32.mrb[0].mxu0
      %v411 = vpop.f32.mrb[0].mxu0
      %412 = vmatprep.mubr.f32.mxu0 0.0
      %413 = vmatmul.mubr.f32.gmra.mrb[0].mxu0 %v158
      %v414 = vpop.f32.mrb[0].mxu0
      %v415 = vadd.f32 0.0, %v414
      %v416 = vpop.f32.mrb[0].mxu0
      %417 = vmatprep.mubr.f32.mxu0 0.0
      %418 = vmatmul.mubr.f32.gmra.mrb[0].mxu0 %v161
      %v419 = vpop.f32.mrb[0].mxu0
      %v420 = vadd.f32 0.0, %v419
      %v421 = vpop.f32.mrb[0].mxu0
      %422 = vdwg.mxu0
      %v423 = vmax.f32 %v247, 0.0
      %v424 = vmax.f32 %v328, 0.0
      %v425 = vmax.f32 %v330, 0.0
      %v426 = vmax.f32 %v251, 0.0
      %v427 = vmax.f32 %v253, 0.0
      %v428 = vmax.f32 %v334, 0.0
      %v429 = vmax.f32 %v336, 0.0
      %v430 = vmax.f32 %v415, 0.0
      %v431 = vmax.f32 %v257, 0.0
      %v432 = vmax.f32 %v259, 0.0
      %v433 = vmax.f32 %v340, 0.0
      %v434 = vmax.f32 %v342, 0.0
      %v435 = vmax.f32 %v420, 0.0
      %436 = vst [vmem:[%s143] sm:$0xff] %v423
      %437 = vst [vmem:[%s143 + $0x8] sm:$0xff] %v424
      %438 = vst [vmem:[%s143 + $0x10] sm:$0xff] %v425
      %v439 = vpack.c.bf16 %v426, %v426
      %v440 = vpack.c.bf16 %v427, %v427
      %v441 = vpack.c.bf16 %v428, %v428
      %v442 = vpack.c.bf16 %v429, %v429
      %v443 = vpack.c.bf16 %v430, %v430
      %v448 = vrot.slane %v439, 4
      %v449 = vrot.slane %v440, 4
      %v450 = vrot.slane %v441, 4
      %v451 = vrot.slane %v442, 4
      %452 = vrot.lane.b32.xlu0 %v448, 127
      %v453 = vpop.permute.xlu0 %452
      %454 = vrot.lane.b32.xlu0 %v449, 127
      %v455 = vpop.permute.xlu0 %454
      %456 = vrot.lane.b32.xlu0 %v450, 127
      %v457 = vpop.permute.xlu0 %456
      %458 = vrot.lane.b32.xlu0 %v451, 127
      %v459 = vpop.permute.xlu0 %458
      %vm460 = vcmask 1039360
      %v461 = vsel %vm460, %v453, %v455
      %v462 = vsel %vm460, %v455, %v457
      %v463 = vsel %vm460, %v457, %v459
      %464 = vrot.lane.b32.xlu0 %v439, 126
      %v465 = vpop.permute.xlu0 %464
      %466 = vrot.lane.b32.xlu0 %v440, 126
      %v467 = vpop.permute.xlu0 %466
      %468 = vrot.lane.b32.xlu0 %v441, 126
      %v469 = vpop.permute.xlu0 %468
      %470 = vrot.lane.b32.xlu0 %v442, 126
      %v471 = vpop.permute.xlu0 %470
      %vm472 = vcmask 1031168
      %v473 = vsel %vm472, %v465, %v467
      %v474 = vsel %vm472, %v467, %v469
      %v475 = vsel %vm472, %v469, %v471
      %476 = vrot.lane.b32.xlu0 %v448, 108
      %v477 = vpop.permute.xlu0 %476
      %478 = vrot.lane.b32.xlu0 %v449, 108
      %v479 = vpop.permute.xlu0 %478
      %480 = vrot.lane.b32.xlu0 %v450, 108
      %v481 = vpop.permute.xlu0 %480
      %482 = vrot.lane.b32.xlu0 %v451, 108
      %v483 = vpop.permute.xlu0 %482
      %vm484 = vcmask 883712
      %v485 = vsel %vm484, %v477, %v479
      %v486 = vsel %vm484, %v479, %v481
      %v487 = vsel %vm484, %v481, %v483
      %488 = vrot.lane.b32.xlu0 %v440, 107
      %v489 = vpop.permute.xlu0 %488
      %490 = vrot.lane.b32.xlu0 %v441, 107
      %v491 = vpop.permute.xlu0 %490
      %492 = vrot.lane.b32.xlu0 %v442, 107
      %v493 = vpop.permute.xlu0 %492
      %vm494 = vcmask 875520
      %v495 = vsel %vm494, %v489, %v491
      %v496 = vsel %vm494, %v491, %v493
      %v498 = vrot.slane %v443, 4
      %499 = vrot.lane.b32.xlu0 %v449, 106
      %v500 = vpop.permute.xlu0 %499
      %501 = vrot.lane.b32.xlu0 %v450, 106
      %v502 = vpop.permute.xlu0 %501
      %503 = vrot.lane.b32.xlu0 %v451, 106
      %v504 = vpop.permute.xlu0 %503
      %505 = vrot.lane.b32.xlu0 %v498, 106
      %v506 = vpop.permute.xlu0 %505
      %vm507 = vcmask 867328
      %v508 = vsel %vm507, %v500, %v502
      %v509 = vsel %vm507, %v502, %v504
      %v510 = vsel %vm507, %v504, %v506
      %511 = vrot.lane.b32.xlu0 %v440, 88
      %v512 = vpop.permute.xlu0 %511
      %513 = vrot.lane.b32.xlu0 %v441, 88
      %v514 = vpop.permute.xlu0 %513
      %515 = vrot.lane.b32.xlu0 %v442, 88
      %v516 = vpop.permute.xlu0 %515
      %517 = vrot.lane.b32.xlu0 %v443, 88
      %v518 = vpop.permute.xlu0 %517
      %vm519 = vcmask 719872
      %v520 = vsel %vm519, %v512, %v514
      %v521 = vsel %vm519, %v514, %v516
      %v522 = vsel %vm519, %v516, %v518
      %523 = vrot.lane.b32.xlu0 %v449, 87
      %v524 = vpop.permute.xlu0 %523
      %525 = vrot.lane.b32.xlu0 %v450, 87
      %v526 = vpop.permute.xlu0 %525
      %527 = vrot.lane.b32.xlu0 %v451, 87
      %v528 = vpop.permute.xlu0 %527
      %529 = vrot.lane.b32.xlu0 %v498, 87
      %v530 = vpop.permute.xlu0 %529
      %vm531 = vcmask 711680
      %v532 = vsel %vm531, %v524, %v526
      %v533 = vsel %vm531, %v526, %v528
      %v534 = vsel %vm531, %v528, %v530
      %535 = vrot.lane.b32.xlu0 %v440, 86
      %v536 = vpop.permute.xlu0 %535
      %537 = vrot.lane.b32.xlu0 %v441, 86
      %v538 = vpop.permute.xlu0 %537
      %539 = vrot.lane.b32.xlu0 %v442, 86
      %v540 = vpop.permute.xlu0 %539
      %541 = vrot.lane.b32.xlu0 %v443, 86
      %v542 = vpop.permute.xlu0 %541
      %vm543 = vcmask 703488
      %v544 = vsel %vm543, %v536, %v538
      %v545 = vsel %vm543, %v538, %v540
      %v546 = vsel %vm543, %v540, %v542
      %vm547 = vcmask 1043456
      %v550 = vsel %vm547, %v439, %v461
      %v553 = vsel %vm547, %v440, %v462
      %v556 = vsel %vm547, %v441, %v463
      %v559 = vsel %vm547, %v442, %v459
      %v562 = vsel %vm547, %v473, %v485
      %v565 = vsel %vm547, %v474, %v486
      %v568 = vsel %vm547, %v475, %v487
      %v571 = vsel %vm547, %v471, %v483
      %v574 = vsel %vm547, %v489, %v500
      %v577 = vsel %vm547, %v495, %v508
      %v580 = vsel %vm547, %v496, %v509
      %v583 = vsel %vm547, %v493, %v510
      %v586 = vsel %vm547, %v512, %v524
      %v589 = vsel %vm547, %v520, %v532
      %v592 = vsel %vm547, %v521, %v533
      %v595 = vsel %vm547, %v522, %v534
      %v596 = vld [vmem:[%s1 + $0x30] sm:$0xff]
      %v597 = vpack.c.bf16 %v596, %v596
      %v598 = vld [vmem:[%s1 + $0x38] sm:$0xff]
      %600 = vset.pattern.permute.xlu0 72
      %601 = vperm.xlu0 %600, %v598
      %v602 = vpop.permute.xlu0 %601
      %620 = vrot.lane.b32.xlu0 %v550, 21
      %v621 = vpop.permute.xlu0 %620
      %622 = vrot.lane.b32.xlu0 %v553, 21
      %v623 = vpop.permute.xlu0 %622
      %624 = vrot.lane.b32.xlu0 %v556, 21
      %v625 = vpop.permute.xlu0 %624
      %626 = vrot.lane.b32.xlu0 %v559, 21
      %v627 = vpop.permute.xlu0 %626
      %628 = vrot.lane.b32.xlu0 %v562, 21
      %v629 = vpop.permute.xlu0 %628
      %630 = vrot.lane.b32.xlu0 %v565, 21
      %v631 = vpop.permute.xlu0 %630
      %632 = vrot.lane.b32.xlu0 %v568, 21
      %v633 = vpop.permute.xlu0 %632
      %634 = vrot.lane.b32.xlu0 %v571, 21
      %v635 = vpop.permute.xlu0 %634
      %636 = vrot.lane.b32.xlu0 %v574, 21
      %v637 = vpop.permute.xlu0 %636
      %638 = vrot.lane.b32.xlu0 %v577, 21
      %v639 = vpop.permute.xlu0 %638
      %640 = vrot.lane.b32.xlu0 %v580, 21
      %v641 = vpop.permute.xlu0 %640
      %642 = vrot.lane.b32.xlu0 %v583, 21
      %v643 = vpop.permute.xlu0 %642
      %644 = vrot.lane.b32.xlu0 %v586, 21
      %v645 = vpop.permute.xlu0 %644
      %646 = vrot.lane.b32.xlu0 %v589, 21
      %v647 = vpop.permute.xlu0 %646
      %648 = vrot.lane.b32.xlu0 %v592, 21
      %v649 = vpop.permute.xlu0 %648
      %650 = vrot.lane.b32.xlu0 %v595, 21
      %v651 = vpop.permute.xlu0 %650
      %652 = vrot.lane.b32.xlu0 %v536, 21
      %v653 = vpop.permute.xlu0 %652
      %654 = vrot.lane.b32.xlu0 %v544, 21
      %v655 = vpop.permute.xlu0 %654
      %656 = vrot.lane.b32.xlu0 %v545, 21
      %v657 = vpop.permute.xlu0 %656
      %658 = vrot.lane.b32.xlu0 %v546, 21
      %v659 = vpop.permute.xlu0 %658
      %vm660 = vcmask 171008
      %v661 = vsel %vm660, %v621, %v623
      %v662 = vsel %vm660, %v623, %v625
      %v663 = vsel %vm660, %v625, %v627
      %v664 = vsel %vm660, %v629, %v631
      %v665 = vsel %vm660, %v631, %v633
      %v666 = vsel %vm660, %v633, %v635
      %v667 = vsel %vm660, %v637, %v639
      %v668 = vsel %vm660, %v639, %v641
      %v669 = vsel %vm660, %v641, %v643
      %v670 = vsel %vm660, %v645, %v647
      %v671 = vsel %vm660, %v647, %v649
      %v672 = vsel %vm660, %v649, %v651
      %v673 = vsel %vm660, %v653, %v655
      %v674 = vsel %vm660, %v655, %v657
      %v675 = vsel %vm660, %v657, %v659
      %vm688 = vcmask 588800
      %v690 = vsel %vm688, %v597, 0
      %v693 = vsel %vm547, %v673, 0
      %v696 = vsel %vm547, %v674, 0
      %v699 = vsel %vm547, %v675, 0
      %701 = vmatprep.subr.bf16.mxu0 %v662
      %702 = vmatpush1.bf16.msra.mxu0 %v661
      %703 = vmatprep.subr.bf16.mxu0 %v665
      %704 = vmatpush1.bf16.msra.mxu0 %v664
      %705 = vmatprep.subr.bf16.mxu0 %v668
      %706 = vmatpush1.bf16.msra.mxu0 %v667
      %707 = vmatprep.subr.bf16.mxu0 %v671
      %708 = vmatpush1.bf16.msra.mxu0 %v670
      %709 = vmatprep.subr.bf16.mxu0 %v696
      %710 = vmatpush1.bf16.msra.mxu0 %v693
      %711 = vmatprep.subr.bf16.mxu0 0
      %712 = vmatpush1.bf16.msra.mxu0 0
      %713 = vmatprep.subr.bf16.mxu0 0
      %714 = vmatpush1.bf16.msra.mxu0 0
      %715 = vmatprep.subr.bf16.mxu0 0
      %716 = vmatpush1.bf16.msra.mxu0 0
      %717 = vmatprep.subr.bf16.mxu0 0
      %718 = vmatpush1.bf16.msra.mxu0 0
      %719 = vmatprep.subr.bf16.mxu0 0
      %720 = vmatpush1.bf16.msra.mxu0 0
      %721 = vmatprep.subr.bf16.mxu0 0
      %722 = vmatpush1.bf16.msra.mxu0 0
      %723 = vmatprep.subr.bf16.mxu0 0
      %724 = vmatpush1.bf16.msra.mxu0 0
      %725 = vmatprep.subr.bf16.mxu0 0
      %726 = vmatpush1.bf16.msra.mxu0 0
      %727 = vmatprep.subr.bf16.mxu0 0
      %728 = vmatpush1.bf16.msra.mxu0 0
      %729 = vmatprep.subr.bf16.mxu0 0
      %730 = vmatpush1.bf16.msra.mxu0 0
      %731 = vmatprep.subr.bf16.mxu0 0
      %732 = vmatpush1.bf16.msra.mxu0 0
      %733 = vmatprep.mubr.bf16.mxu0 0
      %734 = vmatmul.mubr.bf16.gmra.mrb[0].mxu0 %v690
      %v735 = vpop.f32.mrb[0].mxu0
      %v736 = vadd.f32 %v602, %v735
      %v737 = vpop.f32.mrb[0].mxu0
      %v738 = vadd.f32 %v602, %v737
      %v739 = vpop.f32.mrb[0].mxu0
      %v740 = vpop.f32.mrb[0].mxu0
      %741 = vdwg.mxu0
      %742 = vmatprep.subr.bf16.mxu0 0
      %743 = vmatpush1.bf16.msra.mxu0 %v663
      %744 = vmatprep.subr.bf16.mxu0 0
      %745 = vmatpush1.bf16.msra.mxu0 %v666
      %746 = vmatprep.subr.bf16.mxu0 0
      %747 = vmatpush1.bf16.msra.mxu0 %v669
      %748 = vmatprep.subr.bf16.mxu0 0
      %749 = vmatpush1.bf16.msra.mxu0 %v672
      %750 = vmatprep.subr.bf16.mxu0 0
      %751 = vmatpush1.bf16.msra.mxu0 %v699
      %752 = vmatprep.subr.bf16.mxu0 0
      %753 = vmatpush1.bf16.msra.mxu0 0
      %754 = vmatprep.subr.bf16.mxu0 0
      %755 = vmatpush1.bf16.msra.mxu0 0
      %756 = vmatprep.subr.bf16.mxu0 0
      %757 = vmatpush1.bf16.msra.mxu0 0
      %758 = vmatprep.subr.bf16.mxu0 0
      %759 = vmatpush1.bf16.msra.mxu0 0
      %760 = vmatprep.subr.bf16.mxu0 0
      %761 = vmatpush1.bf16.msra.mxu0 0
      %762 = vmatprep.subr.bf16.mxu0 0
      %763 = vmatpush1.bf16.msra.mxu0 0
      %764 = vmatprep.subr.bf16.mxu0 0
      %765 = vmatpush1.bf16.msra.mxu0 0
      %766 = vmatprep.subr.bf16.mxu0 0
      %767 = vmatpush1.bf16.msra.mxu0 0
      %768 = vmatprep.subr.bf16.mxu0 0
      %769 = vmatpush1.bf16.msra.mxu0 0
      %770 = vmatprep.subr.bf16.mxu0 0
      %771 = vmatpush1.bf16.msra.mxu0 0
      %772 = vmatprep.subr.bf16.mxu0 0
      %773 = vmatpush1.bf16.msra.mxu0 0
      %774 = vmatprep.mubr.bf16.mxu0 0
      %775 = vmatmul.mubr.bf16.gmra.mrb[0].mxu0 %v690
      %v776 = vpop.f32.mrb[0].mxu0
      %v777 = vadd.f32 %v602, %v776
      %v778 = vpop.f32.mrb[0].mxu0
      %v779 = vpop.f32.mrb[0].mxu0
      %v780 = vpop.f32.mrb[0].mxu0
      %781 = vdwg.mxu0
      %v782 = vmax.f32 %v736, 0.0
      %v783 = vmax.f32 %v738, 0.0
      %v784 = vmax.f32 %v777, 0.0
      %785 = vst [vmem:[%s143 + $0x18] sm:$0xff] %v782
      %786 = vst [vmem:[%s143 + $0x20] sm:$0xff] %v783
      %787 = vst [vmem:[%s143 + $0x28] sm:$0xff] %v784
      %v788 = vpack.c.bf16 %v431, %v431
      %v789 = vpack.c.bf16 %v432, %v432
      %v790 = vpack.c.bf16 %v433, %v433
      %v791 = vpack.c.bf16 %v434, %v434
      %v792 = vpack.c.bf16 %v435, %v435
      %v797 = vrot.slane %v788, 4
      %v798 = vrot.slane %v789, 4
      %v799 = vrot.slane %v790, 4
      %v800 = vrot.slane %v791, 4
      %801 = vrot.lane.b32.xlu0 %v797, 127
      %v802 = vpop.permute.xlu0 %801
      %803 = vrot.lane.b32.xlu0 %v798, 127
      %v804 = vpop.permute.xlu0 %803
      %805 = vrot.lane.b32.xlu0 %v799, 127
      %v806 = vpop.permute.xlu0 %805
      %807 = vrot.lane.b32.xlu0 %v800, 127
      %v808 = vpop.permute.xlu0 %807
      %v809 = vsel %vm460, %v802, %v804
      %v810 = vsel %vm460, %v804, %v806
      %v811 = vsel %vm460, %v806, %v808
      %812 = vrot.lane.b32.xlu0 %v788, 126
      %v813 = vpop.permute.xlu0 %812
      %814 = vrot.lane.b32.xlu0 %v789, 126
      %v815 = vpop.permute.xlu0 %814
      %816 = vrot.lane.b32.xlu0 %v790, 126
      %v817 = vpop.permute.xlu0 %816
      %818 = vrot.lane.b32.xlu0 %v791, 126
      %v819 = vpop.permute.xlu0 %818
      %v820 = vsel %vm472, %v813, %v815
      %v821 = vsel %vm472, %v815, %v817
      %v822 = vsel %vm472, %v817, %v819
      %823 = vrot.lane.b32.xlu0 %v797, 125
      %v824 = vpop.permute.xlu0 %823
      %825 = vrot.lane.b32.xlu0 %v798, 125
      %v826 = vpop.permute.xlu0 %825
      %827 = vrot.lane.b32.xlu0 %v799, 125
      %v828 = vpop.permute.xlu0 %827
      %829 = vrot.lane.b32.xlu0 %v800, 125
      %v830 = vpop.permute.xlu0 %829
      %vm831 = vcmask 1022976
      %v832 = vsel %vm831, %v824, %v826
      %v833 = vsel %vm831, %v826, %v828
      %v834 = vsel %vm831, %v828, %v830
      %835 = vrot.lane.b32.xlu0 %v788, 124
      %v836 = vpop.permute.xlu0 %835
      %837 = vrot.lane.b32.xlu0 %v789, 124
      %v838 = vpop.permute.xlu0 %837
      %839 = vrot.lane.b32.xlu0 %v790, 124
      %v840 = vpop.permute.xlu0 %839
      %841 = vrot.lane.b32.xlu0 %v791, 124
      %v842 = vpop.permute.xlu0 %841
      %vm843 = vcmask 1014784
      %v844 = vsel %vm843, %v836, %v838
      %v845 = vsel %vm843, %v838, %v840
      %v846 = vsel %vm843, %v840, %v842
      %847 = vrot.lane.b32.xlu0 %v797, 108
      %v848 = vpop.permute.xlu0 %847
      %849 = vrot.lane.b32.xlu0 %v798, 108
      %v850 = vpop.permute.xlu0 %849
      %851 = vrot.lane.b32.xlu0 %v799, 108
      %v852 = vpop.permute.xlu0 %851
      %853 = vrot.lane.b32.xlu0 %v800, 108
      %v854 = vpop.permute.xlu0 %853
      %v855 = vsel %vm484, %v848, %v850
      %v856 = vsel %vm484, %v850, %v852
      %v857 = vsel %vm484, %v852, %v854
      %858 = vrot.lane.b32.xlu0 %v788, 107
      %v859 = vpop.permute.xlu0 %858
      %860 = vrot.lane.b32.xlu0 %v789, 107
      %v861 = vpop.permute.xlu0 %860
      %862 = vrot.lane.b32.xlu0 %v790, 107
      %v863 = vpop.permute.xlu0 %862
      %864 = vrot.lane.b32.xlu0 %v791, 107
      %v865 = vpop.permute.xlu0 %864
      %v866 = vsel %vm494, %v859, %v861
      %v867 = vsel %vm494, %v861, %v863
      %v868 = vsel %vm494, %v863, %v865
      %869 = vrot.lane.b32.xlu0 %v797, 106
      %v870 = vpop.permute.xlu0 %869
      %871 = vrot.lane.b32.xlu0 %v798, 106
      %v872 = vpop.permute.xlu0 %871
      %873 = vrot.lane.b32.xlu0 %v799, 106
      %v874 = vpop.permute.xlu0 %873
      %875 = vrot.lane.b32.xlu0 %v800, 106
      %v876 = vpop.permute.xlu0 %875
      %v877 = vsel %vm507, %v870, %v872
      %v878 = vsel %vm507, %v872, %v874
      %v879 = vsel %vm507, %v874, %v876
      %880 = vrot.lane.b32.xlu0 %v788, 105
      %v881 = vpop.permute.xlu0 %880
      %882 = vrot.lane.b32.xlu0 %v789, 105
      %v883 = vpop.permute.xlu0 %882
      %884 = vrot.lane.b32.xlu0 %v790, 105
      %v885 = vpop.permute.xlu0 %884
      %886 = vrot.lane.b32.xlu0 %v791, 105
      %v887 = vpop.permute.xlu0 %886
      %vm888 = vcmask 859136
      %v889 = vsel %vm888, %v881, %v883
      %v890 = vsel %vm888, %v883, %v885
      %v891 = vsel %vm888, %v885, %v887
      %892 = vrot.lane.b32.xlu0 %v797, 104
      %v893 = vpop.permute.xlu0 %892
      %894 = vrot.lane.b32.xlu0 %v798, 104
      %v895 = vpop.permute.xlu0 %894
      %896 = vrot.lane.b32.xlu0 %v799, 104
      %v897 = vpop.permute.xlu0 %896
      %898 = vrot.lane.b32.xlu0 %v800, 104
      %v899 = vpop.permute.xlu0 %898
      %vm900 = vcmask 850944
      %v901 = vsel %vm900, %v893, %v895
      %v902 = vsel %vm900, %v895, %v897
      %v903 = vsel %vm900, %v897, %v899
      %904 = vrot.lane.b32.xlu0 %v788, 88
      %v905 = vpop.permute.xlu0 %904
      %906 = vrot.lane.b32.xlu0 %v789, 88
      %v907 = vpop.permute.xlu0 %906
      %908 = vrot.lane.b32.xlu0 %v790, 88
      %v909 = vpop.permute.xlu0 %908
      %910 = vrot.lane.b32.xlu0 %v791, 88
      %v911 = vpop.permute.xlu0 %910
      %v912 = vsel %vm519, %v905, %v907
      %v913 = vsel %vm519, %v907, %v909
      %v914 = vsel %vm519, %v909, %v911
      %915 = vrot.lane.b32.xlu0 %v797, 87
      %v916 = vpop.permute.xlu0 %915
      %917 = vrot.lane.b32.xlu0 %v798, 87
      %v918 = vpop.permute.xlu0 %917
      %919 = vrot.lane.b32.xlu0 %v799, 87
      %v920 = vpop.permute.xlu0 %919
      %921 = vrot.lane.b32.xlu0 %v800, 87
      %v922 = vpop.permute.xlu0 %921
      %v923 = vsel %vm531, %v916, %v918
      %v924 = vsel %vm531, %v918, %v920
      %v925 = vsel %vm531, %v920, %v922
      %926 = vrot.lane.b32.xlu0 %v789, 86
      %v927 = vpop.permute.xlu0 %926
      %928 = vrot.lane.b32.xlu0 %v790, 86
      %v929 = vpop.permute.xlu0 %928
      %930 = vrot.lane.b32.xlu0 %v791, 86
      %v931 = vpop.permute.xlu0 %930
      %v932 = vsel %vm543, %v927, %v929
      %v933 = vsel %vm543, %v929, %v931
      %v935 = vrot.slane %v792, 4
      %936 = vrot.lane.b32.xlu0 %v798, 85
      %v937 = vpop.permute.xlu0 %936
      %938 = vrot.lane.b32.xlu0 %v799, 85
      %v939 = vpop.permute.xlu0 %938
      %940 = vrot.lane.b32.xlu0 %v800, 85
      %v941 = vpop.permute.xlu0 %940
      %942 = vrot.lane.b32.xlu0 %v935, 85
      %v943 = vpop.permute.xlu0 %942
      %vm944 = vcmask 695296
      %v945 = vsel %vm944, %v937, %v939
      %v946 = vsel %vm944, %v939, %v941
      %v947 = vsel %vm944, %v941, %v943
      %948 = vrot.lane.b32.xlu0 %v789, 84
      %v949 = vpop.permute.xlu0 %948
      %950 = vrot.lane.b32.xlu0 %v790, 84
      %v951 = vpop.permute.xlu0 %950
      %952 = vrot.lane.b32.xlu0 %v791, 84
      %v953 = vpop.permute.xlu0 %952
      %954 = vrot.lane.b32.xlu0 %v792, 84
      %v955 = vpop.permute.xlu0 %954
      %vm956 = vcmask 687104
      %v957 = vsel %vm956, %v949, %v951
      %v958 = vsel %vm956, %v951, %v953
      %v959 = vsel %vm956, %v953, %v955
      %960 = vrot.lane.b32.xlu0 %v798, 68
      %v961 = vpop.permute.xlu0 %960
      %962 = vrot.lane.b32.xlu0 %v799, 68
      %v963 = vpop.permute.xlu0 %962
      %964 = vrot.lane.b32.xlu0 %v800, 68
      %v965 = vpop.permute.xlu0 %964
      %966 = vrot.lane.b32.xlu0 %v935, 68
      %v967 = vpop.permute.xlu0 %966
      %vm968 = vcmask 556032
      %v969 = vsel %vm968, %v961, %v963
      %v970 = vsel %vm968, %v963, %v965
      %v971 = vsel %vm968, %v965, %v967
      %v974 = vsel %vm547, %v788, %v809
      %v977 = vsel %vm547, %v789, %v810
      %v980 = vsel %vm547, %v790, %v811
      %v983 = vsel %vm547, %v791, %v808
      %v986 = vsel %vm547, %v820, %v832
      %v989 = vsel %vm547, %v821, %v833
      %v992 = vsel %vm547, %v822, %v834
      %v995 = vsel %vm547, %v819, %v830
      %v998 = vsel %vm547, %v844, %v855
      %v1001 = vsel %vm547, %v845, %v856
      %v1004 = vsel %vm547, %v846, %v857
      %v1007 = vsel %vm547, %v842, %v854
      %v1010 = vsel %vm547, %v866, %v877
      %v1013 = vsel %vm547, %v867, %v878
      %v1016 = vsel %vm547, %v868, %v879
      %v1019 = vsel %vm547, %v865, %v876
      %v1022 = vsel %vm547, %v889, %v901
      %v1025 = vsel %vm547, %v890, %v902
      %v1028 = vsel %vm547, %v891, %v903
      %v1031 = vsel %vm547, %v887, %v899
      %v1034 = vsel %vm547, %v912, %v923
      %v1037 = vsel %vm547, %v913, %v924
      %v1040 = vsel %vm547, %v914, %v925
      %v1043 = vsel %vm547, %v911, %v922
      %v1046 = vsel %vm547, %v927, %v937
      %v1049 = vsel %vm547, %v932, %v945
      %v1052 = vsel %vm547, %v933, %v946
      %v1055 = vsel %vm547, %v931, %v947
      %v1058 = vsel %vm547, %v949, %v961
      %v1061 = vsel %vm547, %v957, %v969
      %v1064 = vsel %vm547, %v958, %v970
      %v1067 = vsel %vm547, %v959, %v971
      %1068 = vrot.lane.b32.xlu0 %v935, 127
      %v1069 = vpop.permute.xlu0 %1068
      %v1070 = vsel %vm460, %v808, %v1069
      %1071 = vrot.lane.b32.xlu0 %v792, 126
      %v1072 = vpop.permute.xlu0 %1071
      %v1073 = vsel %vm472, %v819, %v1072
      %1074 = vrot.lane.b32.xlu0 %v935, 125
      %v1075 = vpop.permute.xlu0 %1074
      %v1076 = vsel %vm831, %v830, %v1075
      %1077 = vrot.lane.b32.xlu0 %v789, 109
      %v1078 = vpop.permute.xlu0 %1077
      %1079 = vrot.lane.b32.xlu0 %v790, 109
      %v1080 = vpop.permute.xlu0 %1079
      %1081 = vrot.lane.b32.xlu0 %v791, 109
      %v1082 = vpop.permute.xlu0 %1081
      %1083 = vrot.lane.b32.xlu0 %v792, 109
      %v1084 = vpop.permute.xlu0 %1083
      %vm1085 = vcmask 891904
      %v1086 = vsel %vm1085, %v1078, %v1080
      %v1087 = vsel %vm1085, %v1080, %v1082
      %v1088 = vsel %vm1085, %v1082, %v1084
      %1089 = vrot.lane.b32.xlu0 %v935, 108
      %v1090 = vpop.permute.xlu0 %1089
      %v1091 = vsel %vm484, %v854, %v1090
      %1092 = vrot.lane.b32.xlu0 %v792, 107
      %v1093 = vpop.permute.xlu0 %1092
      %v1094 = vsel %vm494, %v865, %v1093
      %1095 = vrot.lane.b32.xlu0 %v935, 106
      %v1096 = vpop.permute.xlu0 %1095
      %v1097 = vsel %vm507, %v876, %v1096
      %1098 = vrot.lane.b32.xlu0 %v792, 105
      %v1099 = vpop.permute.xlu0 %1098
      %v1100 = vsel %vm888, %v887, %v1099
      %v1102 = vsel %vm547, %v791, %v1070
      %v1105 = vsel %vm547, %v792, %v1069
      %v1108 = vsel %vm547, %v1073, %v1076
      %v1111 = vsel %vm547, %v1072, %v1075
      %v1113 = vsel %vm547, %v1086, %v856
      %v1115 = vsel %vm547, %v1087, %v857
      %v1118 = vsel %vm547, %v1088, %v1091
      %v1121 = vsel %vm547, %v1084, %v1090
      %v1124 = vsel %vm547, %v1094, %v1097
      %v1127 = vsel %vm547, %v1093, %v1096
      %1144 = vrot.lane.b32.xlu0 %v977, 67
      %v1145 = vpop.permute.xlu0 %1144
      %1146 = vrot.lane.b32.xlu0 %v980, 67
      %v1147 = vpop.permute.xlu0 %1146
      %1148 = vrot.lane.b32.xlu0 %v1102, 67
      %v1149 = vpop.permute.xlu0 %1148
      %1150 = vrot.lane.b32.xlu0 %v1105, 67
      %v1151 = vpop.permute.xlu0 %1150
      %1152 = vrot.lane.b32.xlu0 %v989, 67
      %v1153 = vpop.permute.xlu0 %1152
      %1154 = vrot.lane.b32.xlu0 %v992, 67
      %v1155 = vpop.permute.xlu0 %1154
      %1156 = vrot.lane.b32.xlu0 %v1108, 67
      %v1157 = vpop.permute.xlu0 %1156
      %1158 = vrot.lane.b32.xlu0 %v1111, 67
      %v1159 = vpop.permute.xlu0 %1158
      %1160 = vrot.lane.b32.xlu0 %v1113, 67
      %v1161 = vpop.permute.xlu0 %1160
      %1162 = vrot.lane.b32.xlu0 %v1115, 67
      %v1163 = vpop.permute.xlu0 %1162
      %1164 = vrot.lane.b32.xlu0 %v1118, 67
      %v1165 = vpop.permute.xlu0 %1164
      %1166 = vrot.lane.b32.xlu0 %v1121, 67
      %v1167 = vpop.permute.xlu0 %1166
      %1168 = vrot.lane.b32.xlu0 %v1013, 67
      %v1169 = vpop.permute.xlu0 %1168
      %1170 = vrot.lane.b32.xlu0 %v1016, 67
      %v1171 = vpop.permute.xlu0 %1170
      %1172 = vrot.lane.b32.xlu0 %v1124, 67
      %v1173 = vpop.permute.xlu0 %1172
      %1174 = vrot.lane.b32.xlu0 %v1127, 67
      %v1175 = vpop.permute.xlu0 %1174
      %1176 = vrot.lane.b32.xlu0 %v890, 67
      %v1177 = vpop.permute.xlu0 %1176
      %1178 = vrot.lane.b32.xlu0 %v891, 67
      %v1179 = vpop.permute.xlu0 %1178
      %1180 = vrot.lane.b32.xlu0 %v1100, 67
      %v1181 = vpop.permute.xlu0 %1180
      %1182 = vrot.lane.b32.xlu0 %v1099, 67
      %v1183 = vpop.permute.xlu0 %1182
      %vm1184 = vcmask 547840
      %v1185 = vsel %vm1184, %v1145, %v1147
      %v1186 = vsel %vm1184, %v1147, %v1149
      %v1187 = vsel %vm1184, %v1149, %v1151
      %v1188 = vsel %vm1184, %v1153, %v1155
      %v1189 = vsel %vm1184, %v1155, %v1157
      %v1190 = vsel %vm1184, %v1157, %v1159
      %v1191 = vsel %vm1184, %v1161, %v1163
      %v1192 = vsel %vm1184, %v1163, %v1165
      %v1193 = vsel %vm1184, %v1165, %v1167
      %v1194 = vsel %vm1184, %v1169, %v1171
      %v1195 = vsel %vm1184, %v1171, %v1173
      %v1196 = vsel %vm1184, %v1173, %v1175
      %v1197 = vsel %vm1184, %v1177, %v1179
      %v1198 = vsel %vm1184, %v1179, %v1181
      %v1199 = vsel %vm1184, %v1181, %v1183
      %v1200 = vld [vmem:[%s1 + $0x40] sm:$0xff]
      %v1201 = vld [vmem:[%s1 + $0x48] sm:$0xff]
      %v1202 = vpack.c.bf16 %v1200, %v1200
      %v1203 = vpack.c.bf16 %v1201, %v1201
      %1205 = vset.pattern.permute.xlu0 72
      %1206 = vperm.xlu0 %1205, %v1201
      %v1207 = vpop.permute.xlu0 %1206
      %1235 = vrot.lane.b32.xlu0 %v974, 42
      %v1236 = vpop.permute.xlu0 %1235
      %1237 = vrot.lane.b32.xlu0 %v977, 42
      %v1238 = vpop.permute.xlu0 %1237
      %1239 = vrot.lane.b32.xlu0 %v980, 42
      %v1240 = vpop.permute.xlu0 %1239
      %1241 = vrot.lane.b32.xlu0 %v983, 42
      %v1242 = vpop.permute.xlu0 %1241
      %1243 = vrot.lane.b32.xlu0 %v986, 42
      %v1244 = vpop.permute.xlu0 %1243
      %1245 = vrot.lane.b32.xlu0 %v989, 42
      %v1246 = vpop.permute.xlu0 %1245
      %1247 = vrot.lane.b32.xlu0 %v992, 42
      %v1248 = vpop.permute.xlu0 %1247
      %1249 = vrot.lane.b32.xlu0 %v995, 42
      %v1250 = vpop.permute.xlu0 %1249
      %1251 = vrot.lane.b32.xlu0 %v998, 42
      %v1252 = vpop.permute.xlu0 %1251
      %1253 = vrot.lane.b32.xlu0 %v1001, 42
      %v1254 = vpop.permute.xlu0 %1253
      %1255 = vrot.lane.b32.xlu0 %v1004, 42
      %v1256 = vpop.permute.xlu0 %1255
      %1257 = vrot.lane.b32.xlu0 %v1007, 42
      %v1258 = vpop.permute.xlu0 %1257
      %1259 = vrot.lane.b32.xlu0 %v1010, 42
      %v1260 = vpop.permute.xlu0 %1259
      %1261 = vrot.lane.b32.xlu0 %v1013, 42
      %v1262 = vpop.permute.xlu0 %1261
      %1263 = vrot.lane.b32.xlu0 %v1016, 42
      %v1264 = vpop.permute.xlu0 %1263
      %1265 = vrot.lane.b32.xlu0 %v1019, 42
      %v1266 = vpop.permute.xlu0 %1265
      %1267 = vrot.lane.b32.xlu0 %v1022, 42
      %v1268 = vpop.permute.xlu0 %1267
      %1269 = vrot.lane.b32.xlu0 %v1025, 42
      %v1270 = vpop.permute.xlu0 %1269
      %1271 = vrot.lane.b32.xlu0 %v1028, 42
      %v1272 = vpop.permute.xlu0 %1271
      %1273 = vrot.lane.b32.xlu0 %v1031, 42
      %v1274 = vpop.permute.xlu0 %1273
      %1275 = vrot.lane.b32.xlu0 %v1034, 42
      %v1276 = vpop.permute.xlu0 %1275
      %1277 = vrot.lane.b32.xlu0 %v1037, 42
      %v1278 = vpop.permute.xlu0 %1277
      %1279 = vrot.lane.b32.xlu0 %v1040, 42
      %v1280 = vpop.permute.xlu0 %1279
      %1281 = vrot.lane.b32.xlu0 %v1043, 42
      %v1282 = vpop.permute.xlu0 %1281
      %1283 = vrot.lane.b32.xlu0 %v1046, 42
      %v1284 = vpop.permute.xlu0 %1283
      %1285 = vrot.lane.b32.xlu0 %v1049, 42
      %v1286 = vpop.permute.xlu0 %1285
      %1287 = vrot.lane.b32.xlu0 %v1052, 42
      %v1288 = vpop.permute.xlu0 %1287
      %1289 = vrot.lane.b32.xlu0 %v1055, 42
      %v1290 = vpop.permute.xlu0 %1289
      %1291 = vrot.lane.b32.xlu0 %v1058, 42
      %v1292 = vpop.permute.xlu0 %1291
      %1293 = vrot.lane.b32.xlu0 %v1061, 42
      %v1294 = vpop.permute.xlu0 %1293
      %1295 = vrot.lane.b32.xlu0 %v1064, 42
      %v1296 = vpop.permute.xlu0 %1295
      %1297 = vrot.lane.b32.xlu0 %v1067, 42
      %v1298 = vpop.permute.xlu0 %1297
      %1299 = vrot.lane.b32.xlu0 %v1145, 42
      %v1300 = vpop.permute.xlu0 %1299
      %1301 = vrot.lane.b32.xlu0 %v1185, 42
      %v1302 = vpop.permute.xlu0 %1301
      %1303 = vrot.lane.b32.xlu0 %v1186, 42
      %v1304 = vpop.permute.xlu0 %1303
      %1305 = vrot.lane.b32.xlu0 %v1187, 42
      %v1306 = vpop.permute.xlu0 %1305
      %1307 = vrot.lane.b32.xlu0 %v1153, 42
      %v1308 = vpop.permute.xlu0 %1307
      %1309 = vrot.lane.b32.xlu0 %v1188, 42
      %v1310 = vpop.permute.xlu0 %1309
      %1311 = vrot.lane.b32.xlu0 %v1189, 42
      %v1312 = vpop.permute.xlu0 %1311
      %1313 = vrot.lane.b32.xlu0 %v1190, 42
      %v1314 = vpop.permute.xlu0 %1313
      %1315 = vrot.lane.b32.xlu0 %v1161, 42
      %v1316 = vpop.permute.xlu0 %1315
      %1317 = vrot.lane.b32.xlu0 %v1191, 42
      %v1318 = vpop.permute.xlu0 %1317
      %1319 = vrot.lane.b32.xlu0 %v1192, 42
      %v1320 = vpop.permute.xlu0 %1319
      %1321 = vrot.lane.b32.xlu0 %v1193, 42
      %v1322 = vpop.permute.xlu0 %1321
      %1323 = vrot.lane.b32.xlu0 %v1169, 42
      %v1324 = vpop.permute.xlu0 %1323
      %1325 = vrot.lane.b32.xlu0 %v1194, 42
      %v1326 = vpop.permute.xlu0 %1325
      %1327 = vrot.lane.b32.xlu0 %v1195, 42
      %v1328 = vpop.permute.xlu0 %1327
      %1329 = vrot.lane.b32.xlu0 %v1196, 42
      %v1330 = vpop.permute.xlu0 %1329
      %1331 = vrot.lane.b32.xlu0 %v1177, 42
      %v1332 = vpop.permute.xlu0 %1331
      %1333 = vrot.lane.b32.xlu0 %v1197, 42
      %v1334 = vpop.permute.xlu0 %1333
      %1335 = vrot.lane.b32.xlu0 %v1198, 42
      %v1336 = vpop.permute.xlu0 %1335
      %1337 = vrot.lane.b32.xlu0 %v1199, 42
      %v1338 = vpop.permute.xlu0 %1337
      %vm1339 = vcmask 343040
      %v1340 = vsel %vm1339, %v1236, %v1238
      %v1341 = vsel %vm1339, %v1238, %v1240
      %v1342 = vsel %vm1339, %v1240, %v1242
      %v1343 = vsel %vm1339, %v1244, %v1246
      %v1344 = vsel %vm1339, %v1246, %v1248
      %v1345 = vsel %vm1339, %v1248, %v1250
      %v1346 = vsel %vm1339, %v1252, %v1254
      %v1347 = vsel %vm1339, %v1254, %v1256
      %v1348 = vsel %vm1339, %v1256, %v1258
      %v1349 = vsel %vm1339, %v1260, %v1262
      %v1350 = vsel %vm1339, %v1262, %v1264
      %v1351 = vsel %vm1339, %v1264, %v1266
      %v1352 = vsel %vm1339, %v1268, %v1270
      %v1353 = vsel %vm1339, %v1270, %v1272
      %v1354 = vsel %vm1339, %v1272, %v1274
      %v1355 = vsel %vm1339, %v1276, %v1278
      %v1356 = vsel %vm1339, %v1278, %v1280
      %v1357 = vsel %vm1339, %v1280, %v1282
      %v1358 = vsel %vm1339, %v1284, %v1286
      %v1359 = vsel %vm1339, %v1286, %v1288
      %v1360 = vsel %vm1339, %v1288, %v1290
      %v1361 = vsel %vm1339, %v1292, %v1294
      %v1362 = vsel %vm1339, %v1294, %v1296
      %v1363 = vsel %vm1339, %v1296, %v1298
      %v1364 = vsel %vm1339, %v1300, %v1302
      %v1365 = vsel %vm1339, %v1302, %v1304
      %v1366 = vsel %vm1339, %v1304, %v1306
      %v1367 = vsel %vm1339, %v1308, %v1310
      %v1368 = vsel %vm1339, %v1310, %v1312
      %v1369 = vsel %vm1339, %v1312, %v1314
      %v1370 = vsel %vm1339, %v1316, %v1318
      %v1371 = vsel %vm1339, %v1318, %v1320
      %v1372 = vsel %vm1339, %v1320, %v1322
      %v1373 = vsel %vm1339, %v1324, %v1326
      %v1374 = vsel %vm1339, %v1326, %v1328
      %v1375 = vsel %vm1339, %v1328, %v1330
      %v1376 = vsel %vm1339, %v1332, %v1334
      %v1377 = vsel %vm1339, %v1334, %v1336
      %v1378 = vsel %vm1339, %v1336, %v1338
      %v1416 = vsel %vm688, %v1203, 0
      %v1419 = vsel %vm547, %v1376, 0
      %v1422 = vsel %vm547, %v1377, 0
      %v1425 = vsel %vm547, %v1378, 0
      %1427 = vmatprep.subr.bf16.mxu0 %v1341
      %1428 = vmatpush1.bf16.msra.mxu0 %v1340
      %1429 = vmatprep.subr.bf16.mxu0 %v1344
      %1430 = vmatpush1.bf16.msra.mxu0 %v1343
      %1431 = vmatprep.subr.bf16.mxu0 %v1347
      %1432 = vmatpush1.bf16.msra.mxu0 %v1346
      %1433 = vmatprep.subr.bf16.mxu0 %v1350
      %1434 = vmatpush1.bf16.msra.mxu0 %v1349
      %1435 = vmatprep.subr.bf16.mxu0 %v1353
      %1436 = vmatpush1.bf16.msra.mxu0 %v1352
      %1437 = vmatprep.subr.bf16.mxu0 %v1356
      %1438 = vmatpush1.bf16.msra.mxu0 %v1355
      %1439 = vmatprep.subr.bf16.mxu0 %v1359
      %1440 = vmatpush1.bf16.msra.mxu0 %v1358
      %1441 = vmatprep.subr.bf16.mxu0 %v1362
      %1442 = vmatpush1.bf16.msra.mxu0 %v1361
      %1443 = vmatprep.subr.bf16.mxu0 %v1365
      %1444 = vmatpush1.bf16.msra.mxu0 %v1364
      %1445 = vmatprep.subr.bf16.mxu0 %v1368
      %1446 = vmatpush1.bf16.msra.mxu0 %v1367
      %1447 = vmatprep.subr.bf16.mxu0 %v1371
      %1448 = vmatpush1.bf16.msra.mxu0 %v1370
      %1449 = vmatprep.subr.bf16.mxu0 %v1374
      %1450 = vmatpush1.bf16.msra.mxu0 %v1373
      %1451 = vmatprep.subr.bf16.mxu0 %v1422
      %1452 = vmatpush1.bf16.msra.mxu0 %v1419
      %1453 = vmatprep.subr.bf16.mxu0 0
      %1454 = vmatpush1.bf16.msra.mxu0 0
      %1455 = vmatprep.subr.bf16.mxu0 0
      %1456 = vmatpush1.bf16.msra.mxu0 0
      %1457 = vmatprep.subr.bf16.mxu0 0
      %1458 = vmatpush1.bf16.msra.mxu0 0
      %1459 = vmatprep.mubr.bf16.mxu0 %v1416
      %1460 = vmatmul.mubr.bf16.gmra.mrb[0].mxu0 %v1202
      %v1461 = vpop.f32.mrb[0].mxu0
      %v1462 = vadd.f32 %v1207, %v1461
      %v1463 = vpop.f32.mrb[0].mxu0
      %v1464 = vadd.f32 %v1207, %v1463
      %v1465 = vpop.f32.mrb[0].mxu0
      %v1466 = vpop.f32.mrb[0].mxu0
      %1467 = vdwg.mxu0
      %1468 = vmatprep.subr.bf16.mxu0 0
      %1469 = vmatpush1.bf16.msra.mxu0 %v1342
      %1470 = vmatprep.subr.bf16.mxu0 0
      %1471 = vmatpush1.bf16.msra.mxu0 %v1345
      %1472 = vmatprep.subr.bf16.mxu0 0
      %1473 = vmatpush1.bf16.msra.mxu0 %v1348
      %1474 = vmatprep.subr.bf16.mxu0 0
      %1475 = vmatpush1.bf16.msra.mxu0 %v1351
      %1476 = vmatprep.subr.bf16.mxu0 0
      %1477 = vmatpush1.bf16.msra.mxu0 %v1354
      %1478 = vmatprep.subr.bf16.mxu0 0
      %1479 = vmatpush1.bf16.msra.mxu0 %v1357
      %1480 = vmatprep.subr.bf16.mxu0 0
      %1481 = vmatpush1.bf16.msra.mxu0 %v1360
      %1482 = vmatprep.subr.bf16.mxu0 0
      %1483 = vmatpush1.bf16.msra.mxu0 %v1363
      %1484 = vmatprep.subr.bf16.mxu0 0
      %1485 = vmatpush1.bf16.msra.mxu0 %v1366
      %1486 = vmatprep.subr.bf16.mxu0 0
      %1487 = vmatpush1.bf16.msra.mxu0 %v1369
      %1488 = vmatprep.subr.bf16.mxu0 0
      %1489 = vmatpush1.bf16.msra.mxu0 %v1372
      %1490 = vmatprep.subr.bf16.mxu0 0
      %1491 = vmatpush1.bf16.msra.mxu0 %v1375
      %1492 = vmatprep.subr.bf16.mxu0 0
      %1493 = vmatpush1.bf16.msra.mxu0 %v1425
      %1494 = vmatprep.subr.bf16.mxu0 0
      %1495 = vmatpush1.bf16.msra.mxu0 0
      %1496 = vmatprep.subr.bf16.mxu0 0
      %1497 = vmatpush1.bf16.msra.mxu0 0
      %1498 = vmatprep.subr.bf16.mxu0 0
      %1499 = vmatpush1.bf16.msra.mxu0 0
      %1500 = vmatprep.mubr.bf16.mxu0 %v1416
      %1501 = vmatmul.mubr.bf16.gmra.mrb[0].mxu0 %v1202
      %v1502 = vpop.f32.mrb[0].mxu0
      %v1503 = vadd.f32 %v1207, %v1502
      %v1504 = vpop.f32.mrb[0].mxu0
      %v1505 = vpop.f32.mrb[0].mxu0
      %v1506 = vpop.f32.mrb[0].mxu0
      %1507 = vdwg.mxu0
      %v1508 = vmax.f32 %v1462, 0.0
      %v1509 = vmax.f32 %v1464, 0.0
      %v1510 = vmax.f32 %v1503, 0.0
      %1511 = vst [vmem:[%s143 + $0x30] sm:$0xff] %v1508
      %1512 = vst [vmem:[%s143 + $0x38] sm:$0xff] %v1509
      %1513 = vst [vmem:[%s143 + $0x40] sm:$0xff] %v1510
      %1514 = vrot.lane.b32.xlu0 %v145, 127
      %v1515 = vpop.permute.xlu0 %1514
      %1516 = vrot.lane.b32.xlu0 %v146, 127
      %v1517 = vpop.permute.xlu0 %1516
      %1518 = vrot.lane.b32.xlu0 %v147, 127
      %v1519 = vpop.permute.xlu0 %1518
      %1520 = vrot.lane.b32.xlu0 %v148, 127
      %v1521 = vpop.permute.xlu0 %1520
      %vm1522 = vcmask 1039360
      %v1523 = vsel %vm1522, %v1515, %v1517
      %v1524 = vsel %vm1522, %v1517, %v1519
      %v1525 = vsel %vm1522, %v1519, %v1521
      %v1530 = vmax.f32 %v145, %v1523
      %v1531 = vmax.f32 %v146, %v1524
      %v1532 = vmax.f32 %v147, %v1525
      %v1533 = vmax.f32 %v148, %v1521
      %1534 = vrot.lane.b32.xlu0 %v145, 126
      %v1535 = vpop.permute.xlu0 %1534
      %1536 = vrot.lane.b32.xlu0 %v146, 126
      %v1537 = vpop.permute.xlu0 %1536
      %1538 = vrot.lane.b32.xlu0 %v147, 126
      %v1539 = vpop.permute.xlu0 %1538
      %1540 = vrot.lane.b32.xlu0 %v148, 126
      %v1541 = vpop.permute.xlu0 %1540
      %vm1542 = vcmask 1031168
      %v1543 = vsel %vm1542, %v1535, %v1537
      %v1544 = vsel %vm1542, %v1537, %v1539
      %v1545 = vsel %vm1542, %v1539, %v1541
      %v1550 = vmax.f32 %v1530, %v1543
      %v1551 = vmax.f32 %v1531, %v1544
      %v1552 = vmax.f32 %v1532, %v1545
      %v1553 = vmax.f32 %v1533, %v1541
      %1554 = vrot.lane.b32.xlu0 %v145, 108
      %v1555 = vpop.permute.xlu0 %1554
      %1556 = vrot.lane.b32.xlu0 %v146, 108
      %v1557 = vpop.permute.xlu0 %1556
      %1558 = vrot.lane.b32.xlu0 %v147, 108
      %v1559 = vpop.permute.xlu0 %1558
      %1560 = vrot.lane.b32.xlu0 %v148, 108
      %v1561 = vpop.permute.xlu0 %1560
      %vm1562 = vcmask 883712
      %v1563 = vsel %vm1562, %v1555, %v1557
      %v1564 = vsel %vm1562, %v1557, %v1559
      %v1565 = vsel %vm1562, %v1559, %v1561
      %v1570 = vmax.f32 %v1550, %v1563
      %v1571 = vmax.f32 %v1551, %v1564
      %v1572 = vmax.f32 %v1552, %v1565
      %v1573 = vmax.f32 %v1553, %v1561
      %1574 = vrot.lane.b32.xlu0 %v146, 107
      %v1575 = vpop.permute.xlu0 %1574
      %1576 = vrot.lane.b32.xlu0 %v147, 107
      %v1577 = vpop.permute.xlu0 %1576
      %1578 = vrot.lane.b32.xlu0 %v148, 107
      %v1579 = vpop.permute.xlu0 %1578
      %vm1580 = vcmask 875520
      %v1581 = vsel %vm1580, %v1575, %v1577
      %v1582 = vsel %vm1580, %v1577, %v1579
      %v1587 = vmax.f32 %v1570, %v1575
      %v1588 = vmax.f32 %v1571, %v1581
      %v1589 = vmax.f32 %v1572, %v1582
      %v1590 = vmax.f32 %v1573, %v1579
      %1591 = vrot.lane.b32.xlu0 %v146, 106
      %v1592 = vpop.permute.xlu0 %1591
      %1593 = vrot.lane.b32.xlu0 %v147, 106
      %v1594 = vpop.permute.xlu0 %1593
      %1595 = vrot.lane.b32.xlu0 %v148, 106
      %v1596 = vpop.permute.xlu0 %1595
      %1597 = vrot.lane.b32.xlu0 %v149, 106
      %v1598 = vpop.permute.xlu0 %1597
      %vm1599 = vcmask 867328
      %v1600 = vsel %vm1599, %v1592, %v1594
      %v1601 = vsel %vm1599, %v1594, %v1596
      %v1602 = vsel %vm1599, %v1596, %v1598
      %v1607 = vmax.f32 %v1587, %v1592
      %v1608 = vmax.f32 %v1588, %v1600
      %v1609 = vmax.f32 %v1589, %v1601
      %v1610 = vmax.f32 %v1590, %v1602
      %1611 = vrot.lane.b32.xlu0 %v146, 88
      %v1612 = vpop.permute.xlu0 %1611
      %1613 = vrot.lane.b32.xlu0 %v147, 88
      %v1614 = vpop.permute.xlu0 %1613
      %1615 = vrot.lane.b32.xlu0 %v148, 88
      %v1616 = vpop.permute.xlu0 %1615
      %1617 = vrot.lane.b32.xlu0 %v149, 88
      %v1618 = vpop.permute.xlu0 %1617
      %vm1619 = vcmask 719872
      %v1620 = vsel %vm1619, %v1612, %v1614
      %v1621 = vsel %vm1619, %v1614, %v1616
      %v1622 = vsel %vm1619, %v1616, %v1618
      %v1627 = vmax.f32 %v1607, %v1612
      %v1628 = vmax.f32 %v1608, %v1620
      %v1629 = vmax.f32 %v1609, %v1621
      %v1630 = vmax.f32 %v1610, %v1622
      %1631 = vrot.lane.b32.xlu0 %v146, 87
      %v1632 = vpop.permute.xlu0 %1631
      %1633 = vrot.lane.b32.xlu0 %v147, 87
      %v1634 = vpop.permute.xlu0 %1633
      %1635 = vrot.lane.b32.xlu0 %v148, 87
      %v1636 = vpop.permute.xlu0 %1635
      %1637 = vrot.lane.b32.xlu0 %v149, 87
      %v1638 = vpop.permute.xlu0 %1637
      %vm1639 = vcmask 711680
      %v1640 = vsel %vm1639, %v1632, %v1634
      %v1641 = vsel %vm1639, %v1634, %v1636
      %v1642 = vsel %vm1639, %v1636, %v1638
      %v1647 = vmax.f32 %v1627, %v1632
      %v1648 = vmax.f32 %v1628, %v1640
      %v1649 = vmax.f32 %v1629, %v1641
      %v1650 = vmax.f32 %v1630, %v1642
      %1651 = vrot.lane.b32.xlu0 %v146, 86
      %v1652 = vpop.permute.xlu0 %1651
      %1653 = vrot.lane.b32.xlu0 %v147, 86
      %v1654 = vpop.permute.xlu0 %1653
      %1655 = vrot.lane.b32.xlu0 %v148, 86
      %v1656 = vpop.permute.xlu0 %1655
      %1657 = vrot.lane.b32.xlu0 %v149, 86
      %v1658 = vpop.permute.xlu0 %1657
      %vm1659 = vcmask 703488
      %v1660 = vsel %vm1659, %v1652, %v1654
      %v1661 = vsel %vm1659, %v1654, %v1656
      %v1662 = vsel %vm1659, %v1656, %v1658
      %v1667 = vmax.f32 %v1647, %v1652
      %v1668 = vmax.f32 %v1648, %v1660
      %v1669 = vmax.f32 %v1649, %v1661
      %v1670 = vmax.f32 %v1650, %v1662
      %v1671 = vmax.f32 %v1667, 0.0
      %v1672 = vmax.f32 %v1668, 0.0
      %v1673 = vmax.f32 %v1669, 0.0
      %v1674 = vmax.f32 %v1670, 0.0
      %v1675 = vld [vmem:[%s1 + $0x50] sm:$0xff]
      %v1676 = vld [vmem:[%s1 + $0x58] sm:$0xff]
      %1678 = vset.pattern.permute.xlu0 72
      %1679 = vperm.xlu0 %1678, %v1676
      %v1680 = vpop.permute.xlu0 %1679
      %1686 = vrot.lane.b32.xlu0 %v1671, 21
      %v1687 = vpop.permute.xlu0 %1686
      %1688 = vrot.lane.b32.xlu0 %v1672, 21
      %v1689 = vpop.permute.xlu0 %1688
      %1690 = vrot.lane.b32.xlu0 %v1673, 21
      %v1691 = vpop.permute.xlu0 %1690
      %1692 = vrot.lane.b32.xlu0 %v1674, 21
      %v1693 = vpop.permute.xlu0 %1692
      %vm1694 = vcmask 171008
      %v1695 = vsel %vm1694, %v1687, %v1689
      %v1696 = vsel %vm1694, %v1689, %v1691
      %v1697 = vsel %vm1694, %v1691, %v1693
      %vm1698 = vcmask 31744
      %v1700 = vsel %vm1698, %v1675, 0
      %v1702 = vsel %vm547, %v1695, 0
      %v1704 = vsel %vm547, %v1696, 0
      %v1706 = vsel %vm547, %v1697, 0
      %1708 = vmatprep.subr.mxu0 %v1704
      %1709 = vmatpush1.msra.mxu0 %v1702
      %1710 = vmatprep.subr.mxu0 0.0
      %1711 = vmatpush1.msra.mxu0 0.0
      %1712 = vmatprep.subr.mxu0 0.0
      %1713 = vmatpush1.msra.mxu0 0.0
      %1714 = vmatprep.subr.mxu0 0.0
      %1715 = vmatpush1.msra.mxu0 0.0
      %1716 = vmatprep.subr.mxu0 0.0
      %1717 = vmatpush1.msra.mxu0 0.0
      %1718 = vmatprep.subr.mxu0 0.0
      %1719 = vmatpush1.msra.mxu0 0.0
      %1720 = vmatprep.subr.mxu0 0.0
      %1721 = vmatpush1.msra.mxu0 0.0
      %1722 = vmatprep.subr.mxu0 0.0
      %1723 = vmatpush1.msra.mxu0 0.0
      %1724 = vmatprep.subr.mxu0 0.0
      %1725 = vmatpush1.msra.mxu0 0.0
      %1726 = vmatprep.subr.mxu0 0.0
      %1727 = vmatpush1.msra.mxu0 0.0
      %1728 = vmatprep.subr.mxu0 0.0
      %1729 = vmatpush1.msra.mxu0 0.0
      %1730 = vmatprep.subr.mxu0 0.0
      %1731 = vmatpush1.msra.mxu0 0.0
      %1732 = vmatprep.subr.mxu0 0.0
      %1733 = vmatpush1.msra.mxu0 0.0
      %1734 = vmatprep.subr.mxu0 0.0
      %1735 = vmatpush1.msra.mxu0 0.0
      %1736 = vmatprep.subr.mxu0 0.0
      %1737 = vmatpush1.msra.mxu0 0.0
      %1738 = vmatprep.subr.mxu0 0.0
      %1739 = vmatpush1.msra.mxu0 0.0
      %1740 = vmatprep.subr.mxu0 0.0
      %1741 = vmatpush1.msra.mxu0 0.0
      %1742 = vmatprep.subr.mxu0 0.0
      %1743 = vmatpush1.msra.mxu0 0.0
      %1744 = vmatprep.subr.mxu0 0.0
      %1745 = vmatpush1.msra.mxu0 0.0
      %1746 = vmatprep.subr.mxu0 0.0
      %1747 = vmatpush1.msra.mxu0 0.0
      %1748 = vmatprep.subr.mxu0 0.0
      %1749 = vmatpush1.msra.mxu0 0.0
      %1750 = vmatprep.subr.mxu0 0.0
      %1751 = vmatpush1.msra.mxu0 0.0
      %1752 = vmatprep.subr.mxu0 0.0
      %1753 = vmatpush1.msra.mxu0 0.0
      %1754 = vmatprep.subr.mxu0 0.0
      %1755 = vmatpush1.msra.mxu0 0.0
      %1756 = vmatprep.subr.mxu0 0.0
      %1757 = vmatpush1.msra.mxu0 0.0
      %1758 = vmatprep.subr.mxu0 0.0
      %1759 = vmatpush1.msra.mxu0 0.0
      %1760 = vmatprep.subr.mxu0 0.0
      %1761 = vmatpush1.msra.mxu0 0.0
      %1762 = vmatprep.subr.mxu0 0.0
      %1763 = vmatpush1.msra.mxu0 0.0
      %1764 = vmatprep.subr.mxu0 0.0
      %1765 = vmatpush1.msra.mxu0 0.0
      %1766 = vmatprep.subr.mxu0 0.0
      %1767 = vmatpush1.msra.mxu0 0.0
      %1768 = vmatprep.subr.mxu0 0.0
      %1769 = vmatpush1.msra.mxu0 0.0
      %1770 = vmatprep.subr.mxu0 0.0
      %1771 = vmatpush1.msra.mxu0 0.0
      %1772 = vmatprep.mubr.f32.mxu0 0.0
      %1773 = vmatmul.mubr.f32.gmra.mrb[0].mxu0 %v1700
      %v1774 = vpop.f32.mrb[0].mxu0
      %v1775 = vadd.f32 %v1680, %v1774
      %v1776 = vpop.f32.mrb[0].mxu0
      %v1777 = vadd.f32 %v1680, %v1776
      %1778 = vdwg.mxu0
      %1779 = vmatprep.subr.mxu0 0.0
      %1780 = vmatpush1.msra.mxu0 %v1706
      %1781 = vmatprep.subr.mxu0 0.0
      %1782 = vmatpush1.msra.mxu0 0.0
      %1783 = vmatprep.subr.mxu0 0.0
      %1784 = vmatpush1.msra.mxu0 0.0
      %1785 = vmatprep.subr.mxu0 0.0
      %1786 = vmatpush1.msra.mxu0 0.0
      %1787 = vmatprep.subr.mxu0 0.0
      %1788 = vmatpush1.msra.mxu0 0.0
      %1789 = vmatprep.subr.mxu0 0.0
      %1790 = vmatpush1.msra.mxu0 0.0
      %1791 = vmatprep.subr.mxu0 0.0
      %1792 = vmatpush1.msra.mxu0 0.0
      %1793 = vmatprep.subr.mxu0 0.0
      %1794 = vmatpush1.msra.mxu0 0.0
      %1795 = vmatprep.subr.mxu0 0.0
      %1796 = vmatpush1.msra.mxu0 0.0
      %1797 = vmatprep.subr.mxu0 0.0
      %1798 = vmatpush1.msra.mxu0 0.0
      %1799 = vmatprep.subr.mxu0 0.0
      %1800 = vmatpush1.msra.mxu0 0.0
      %1801 = vmatprep.subr.mxu0 0.0
      %1802 = vmatpush1.msra.mxu0 0.0
      %1803 = vmatprep.subr.mxu0 0.0
      %1804 = vmatpush1.msra.mxu0 0.0
      %1805 = vmatprep.subr.mxu0 0.0
      %1806 = vmatpush1.msra.mxu0 0.0
      %1807 = vmatprep.subr.mxu0 0.0
      %1808 = vmatpush1.msra.mxu0 0.0
      %1809 = vmatprep.subr.mxu0 0.0
      %1810 = vmatpush1.msra.mxu0 0.0
      %1811 = vmatprep.subr.mxu0 0.0
      %1812 = vmatpush1.msra.mxu0 0.0
      %1813 = vmatprep.subr.mxu0 0.0
      %1814 = vmatpush1.msra.mxu0 0.0
      %1815 = vmatprep.subr.mxu0 0.0
      %1816 = vmatpush1.msra.mxu0 0.0
      %1817 = vmatprep.subr.mxu0 0.0
      %1818 = vmatpush1.msra.mxu0 0.0
      %1819 = vmatprep.subr.mxu0 0.0
      %1820 = vmatpush1.msra.mxu0 0.0
      %1821 = vmatprep.subr.mxu0 0.0
      %1822 = vmatpush1.msra.mxu0 0.0
      %1823 = vmatprep.subr.mxu0 0.0
      %1824 = vmatpush1.msra.mxu0 0.0
      %1825 = vmatprep.subr.mxu0 0.0
      %1826 = vmatpush1.msra.mxu0 0.0
      %1827 = vmatprep.subr.mxu0 0.0
      %1828 = vmatpush1.msra.mxu0 0.0
      %1829 = vmatprep.subr.mxu0 0.0
      %1830 = vmatpush1.msra.mxu0 0.0
      %1831 = vmatprep.subr.mxu0 0.0
      %1832 = vmatpush1.msra.mxu0 0.0
      %1833 = vmatprep.subr.mxu0 0.0
      %1834 = vmatpush1.msra.mxu0 0.0
      %1835 = vmatprep.subr.mxu0 0.0
      %1836 = vmatpush1.msra.mxu0 0.0
      %1837 = vmatprep.subr.mxu0 0.0
      %1838 = vmatpush1.msra.mxu0 0.0
      %1839 = vmatprep.subr.mxu0 0.0
      %1840 = vmatpush1.msra.mxu0 0.0
      %1841 = vmatprep.subr.mxu0 0.0
      %1842 = vmatpush1.msra.mxu0 0.0
      %1843 = vmatprep.mubr.f32.mxu0 0.0
      %1844 = vmatmul.mubr.f32.gmra.mrb[0].mxu0 %v1700
      %v1845 = vpop.f32.mrb[0].mxu0
      %v1846 = vadd.f32 %v1680, %v1845
      %v1847 = vpop.f32.mrb[0].mxu0
      %1848 = vdwg.mxu0
      %v1849 = vmax.f32 %v1775, 0.0
      %v1850 = vmax.f32 %v1777, 0.0
      %v1851 = vmax.f32 %v1846, 0.0
      %1852 = vst [vmem:[%s143 + $0x48] sm:$0xff] %v1849
      %1853 = vst [vmem:[%s143 + $0x50] sm:$0xff] %v1850
      %1854 = vst [vmem:[%s143 + $0x58] sm:$0xff] %v1851
      %p1855 = scmp.lt.s32.totalorder %s13, 1
      %s1856 = scalar_select %p1855, %s13, 1
      %s1857 = smul.addr %s1856, 12
      %s1858 = smul.addr %s1857, 8
      %s1859 = scalar_lea.vmem %s2, %s1858
      // Predicated region
      $region29: #{inception_forward.1} parent=27 // pred_check
        %p1860 = pneg %p78
      $region30: #{inception_forward.1} parent=27 // pred_check_branch
        %1862 = sbr.rel (%p1860) target = $region32
      $region31: #{inception_forward.1} parent=27 // pred_region
        _
      $region32: #{inception_forward.1} parent=27 // pred_fallthru
        _
    $region28: #{inception_forward.1} parent=5 // pred_fallthru
      _
    %p1863 = scmp.le.s32.totalorder 2, %s8
    // Predicated region
    $region33: #{inception_forward.1} parent=5 // pred_check
      %p1864 = pneg %p1863
    $region34: #{inception_forward.1} parent=5 // pred_check_branch
      %1866 = sbr.rel (%p1864) target = $region36
    $region35: #{inception_forward.1} parent=5 // pred_region
      %s1867 = ssub.s32 %s8, 2
      // Predicated region
      $region37: #{inception_forward.1} parent=35 // pred_check
        %p1868 = pneg %p84
      $region38: #{inception_forward.1} parent=35 // pred_check_branch
        %1870 = sbr.rel (%p1868) target = $region40
      $region39: #{inception_forward.1} parent=35 // pred_region
        %p1871 = scmp.lt.s32.totalorder %s14, 1
        %s1872 = scalar_select %p1871, %s14, 1
        %s1873 = smul.addr %s1872, 12
        %s1874 = smul.addr %s1873, 8
        %s1875 = scalar_lea.vmem %s2, %s1874
      $region40: #{inception_forward.1} parent=35 // pred_fallthru
        _
    $region36: #{inception_forward.1} parent=5 // pred_fallthru
      _
  $region6: #{inception_forward.1} parent=0 // loop_footer
    %s12 = sadd.s32 1, %s8
  $region7: #{inception_forward.1} parent=0 // loop_footer_branch
    %7 = sbr.rel target = $region3
  $region8: #{inception_forward.1} parent=0 // loop_exit
    _

</llo_original>
